<compile_context>
chip_gen: v6e
topology: v6e:2x2x1
jax: 0.10.0
libtpu: 0.0.40
codegen_flags: <defaults>
</compile_context>

<pallas_src>
import functools

import jax
import jax.numpy as jnp
from jax.experimental import pallas as pl
from jax.experimental.pallas import tpu as pltpu


# ----------------------------------------------------------------------------
# Pallas GRU kernel (single invocation, in-kernel unrolled recurrence)
# ----------------------------------------------------------------------------
def gru_kernel(x_ref, wih_ref, whh_ref, bih_ref, bhh_ref, out_ref, *, seq_len):
    """Full-sequence GRU, final hidden only.

    x_ref   : (S*B, E)    embedded inputs, time-major rows (t*B + b)
    wih_ref : (E, 3*Hp)   fused input weights, gate order [r | z | n]
    whh_ref : (Hp, 3*Hp)  fused hidden weights, gate order [r | z | n]
    bih_ref : (1, 3*Hp)   fused input bias
    bhh_ref : (1, 3*Hp)   fused hidden bias
    out_ref : (B, Hp)     final hidden state (lane-padded)
    """
    B, Hp = out_ref.shape

    # ---- Prologue: input projection for ALL timesteps in one MXU matmul.
    #      (S*B, E) @ (E, 3*Hp)  -- not on the serial critical path.
    xg = jnp.dot(x_ref[...], wih_ref[...],
                 preferred_element_type=jnp.float32) + bih_ref[...]

    w_hh = whh_ref[...]
    b_hh = bhh_ref[...]

    # ---- Recurrence: one fused (B, Hp) @ (Hp, 3*Hp) matmul per step.
    h = jnp.zeros((B, Hp), jnp.float32)
    for t in range(seq_len):                       # S is small & static: unroll
        xg_t = xg[t * B:(t + 1) * B, :]            # (B, 3*Hp) static slice
        hg = jnp.dot(h, w_hh, preferred_element_type=jnp.float32) + b_hh

        i_r, i_z, i_n = xg_t[:, :Hp], xg_t[:, Hp:2 * Hp], xg_t[:, 2 * Hp:]
        h_r, h_z, h_n = hg[:, :Hp], hg[:, Hp:2 * Hp], hg[:, 2 * Hp:]

        r = jax.nn.sigmoid(i_r + h_r)
        z = jax.nn.sigmoid(i_z + h_z)
        n = jnp.tanh(i_n + r * h_n)                # PyTorch: tanh(i_n + r*(h@W_hn + b_hn))
        h = (1.0 - z) * n + z * h

    out_ref[...] = h


def gru_forward(embedded, w_ih_p, w_hh_p, b_ih_p, b_hh_p):
    """embedded: (S, B, E) f32. Returns final hidden (B, Hp) f32 (lane-padded)."""
    S, B, E = embedded.shape
    Hp = w_hh_p.shape[0]
    x_flat = embedded.reshape(S * B, E)            # reshape done in plain JAX

    vmem = pl.BlockSpec(memory_space=pltpu.MemorySpace.VMEM)
    return pl.pallas_call(
        functools.partial(gru_kernel, seq_len=S),
        out_shape=jax.ShapeDtypeStruct((B, Hp), jnp.float32),
        in_specs=[vmem, vmem, vmem, vmem, vmem],
        out_specs=vmem,
    )(x_flat, w_ih_p, w_hh_p, b_ih_p, b_hh_p)


# ----------------------------------------------------------------------------
# Parameter init + packing (fused / lane-padded layout)
# ----------------------------------------------------------------------------
def _pad_last(a, target):
    return jnp.pad(a, [(0, 0)] * (a.ndim - 1) + [(0, target - a.shape[-1])])


def pack_gru_params(w_ih, w_hh, b_ih, b_hh, lane=128):
    """Pack PyTorch-order [r,z,n] per-gate weights into fused, lane-padded mats."""
    _, _, H = w_ih.shape
    Hp = ((H + lane - 1) // lane) * lane
    w_ih_p = jnp.concatenate([_pad_last(w_ih[g], Hp) for g in range(3)], -1)   # (E, 3Hp)
    w_hh_rows = jnp.pad(w_hh, ((0, 0), (0, Hp - H), (0, 0)))                   # (3, Hp, H)
    w_hh_p = jnp.concatenate([_pad_last(w_hh_rows[g], Hp) for g in range(3)], -1)  # (Hp, 3Hp)
    b_ih_p = jnp.concatenate([_pad_last(b_ih[g], Hp) for g in range(3)], -1)[None]  # (1, 3Hp)
    b_hh_p = jnp.concatenate([_pad_last(b_hh[g], Hp) for g in range(3)], -1)[None]
    return dict(w_ih_p=w_ih_p, w_hh_p=w_hh_p, b_ih_p=b_ih_p, b_hh_p=b_hh_p)


def init_encoder_params(key, input_dim, emb_dim, hid_dim):
    k0, k1, k2, k3, k4 = jax.random.split(key, 5)
    scale = 1.0 / jnp.sqrt(hid_dim)

    emb = jax.random.normal(k0, (input_dim, emb_dim), jnp.float32)
    emb = emb.at[1].set(0.0)  # padding_idx=1 row is zero-initialized

    # PyTorch nn.GRU gate order [r, z, n]; stored already transposed for x @ W.
    w_ih = jax.random.uniform(k1, (3, emb_dim, hid_dim), jnp.float32, -scale, scale)
    w_hh = jax.random.uniform(k2, (3, hid_dim, hid_dim), jnp.float32, -scale, scale)
    b_ih = jax.random.uniform(k3, (3, hid_dim), jnp.float32, -scale, scale)
    b_hh = jax.random.uniform(k4, (3, hid_dim), jnp.float32, -scale, scale)

    params = dict(emb=emb, hid_dim=hid_dim,
                  raw=dict(w_ih=w_ih, w_hh=w_hh, b_ih=b_ih, b_hh=b_hh))
    params.update(pack_gru_params(w_ih, w_hh, b_ih, b_hh))
    return params


def encoder_forward(params, src):
    """src: (seq_len, batch) int32. Returns hidden (1, batch, hid_dim)."""
    # Embedding lookup (plain-JAX gather glue) + .float()
    embedded = jnp.take(params["emb"], src, axis=0).astype(jnp.float32)
    # TODO(synk): nn.Dropout is identity in eval mode; training-mode dropout
    # mask (pltpu.prng_random_bits) not implemented here.
    h = gru_forward(embedded, params["w_ih_p"], params["w_hh_p"],
                    params["b_ih_p"], params["b_hh_p"])
    return h[None, :, :params["hid_dim"]]          # strip lane padding -> (1, B, H)


# ----------------------------------------------------------------------------
# Pure-JAX reference GRU (for correctness check)
# ----------------------------------------------------------------------------
def encoder_reference(params, src):
    raw = params["raw"]
    embedded = jnp.take(params["emb"], src, axis=0).astype(jnp.float32)
    B = src.shape[1]
    H = params["hid_dim"]
    h0 = jnp.zeros((B, H), jnp.float32)
    hi = jax.lax.Precision.HIGHEST

    def step(h, x):
        i_r = jnp.dot(x, raw["w_ih"][0], precision=hi) + raw["b_ih"][0]
        i_z = jnp.dot(x, raw["w_ih"][1], precision=hi) + raw["b_ih"][1]
        i_n = jnp.dot(x, raw["w_ih"][2], precision=hi) + raw["b_ih"][2]
        h_r = jnp.dot(h, raw["w_hh"][0], precision=hi) + raw["b_hh"][0]
        h_z = jnp.dot(h, raw["w_hh"][1], precision=hi) + raw["b_hh"][1]
        h_n = jnp.dot(h, raw["w_hh"][2], precision=hi) + raw["b_hh"][2]
        r = jax.nn.sigmoid(i_r + h_r)
        z = jax.nn.sigmoid(i_z + h_z)
        n = jnp.tanh(i_n + r * h_n)
        return (1.0 - z) * n + z * h, None

    h_final, _ = jax.lax.scan(step, h0, embedded)
    return h_final[None]  # (1, B, H)


if __name__ == "__main__":
    INPUT_DIM = 50   # vocab size
    EMB_DIM = 16
    HID_DIM = 32
    SEQ_LEN = 8
    BATCH = 4

    key = jax.random.PRNGKey(0)
    kp, ks = jax.random.split(key)
    params = init_encoder_params(kp, INPUT_DIM, EMB_DIM, HID_DIM)
    src = jax.random.randint(ks, (SEQ_LEN, BATCH), 0, INPUT_DIM, jnp.int32)

    hidden = jax.block_until_ready(encoder_forward(params, src))
    ref = jax.block_until_ready(encoder_reference(params, src))

    assert hidden.shape == (1, BATCH, HID_DIM)
    assert jnp.allclose(hidden, ref, atol=1e-5, rtol=1e-5), (
        float(jnp.max(jnp.abs(hidden - ref))))

    print("KERNEL_OK")
</pallas_src>

<mosaic_0001>
module attributes {stable_mosaic.version = 11 : i64} {
  func.func @gru_kernel(%arg0: memref<32x16xf32, #tpu.memory_space<vmem>>, %arg1: memref<16x384xf32, #tpu.memory_space<vmem>>, %arg2: memref<128x384xf32, #tpu.memory_space<vmem>>, %arg3: memref<1x384xf32, #tpu.memory_space<vmem>>, %arg4: memref<1x384xf32, #tpu.memory_space<vmem>>, %arg5: memref<4x128xf32, #tpu.memory_space<vmem>>) attributes {dimension_semantics = [], scalar_prefetch = 0 : i64, scratch_operands = 0 : i64, tpu.core_type = #tpu.core_type<tc>} {
    %c0 = arith.constant 0 : index
    %c0_0 = arith.constant 0 : index
    %0 = vector.load %arg0[%c0, %c0_0] : memref<32x16xf32, #tpu.memory_space<vmem>>, vector<32x16xf32>
    %c0_1 = arith.constant 0 : index
    %c0_2 = arith.constant 0 : index
    %1 = vector.load %arg1[%c0_1, %c0_2] : memref<16x384xf32, #tpu.memory_space<vmem>>, vector<16x384xf32>
    %cst = arith.constant dense<0.000000e+00> : vector<32x384xf32>
    %2 = tpu.matmul %0, %1, %cst {dimension_numbers = #tpu.dot_dimension_numbers<[1], [0], [0], [1], [0, 0, 1, 1], [], []>} : vector<32x16xf32>, vector<16x384xf32>, vector<32x384xf32> -> vector<32x384xf32>
    %c0_3 = arith.constant 0 : index
    %c0_4 = arith.constant 0 : index
    %3 = vector.load %arg3[%c0_3, %c0_4] : memref<1x384xf32, #tpu.memory_space<vmem>>, vector<1x384xf32>
    %4 = vector.broadcast %3 : vector<1x384xf32> to vector<32x384xf32>
    %5 = arith.addf %2, %4 : vector<32x384xf32>
    %c0_5 = arith.constant 0 : index
    %c0_6 = arith.constant 0 : index
    %6 = vector.load %arg2[%c0_5, %c0_6] : memref<128x384xf32, #tpu.memory_space<vmem>>, vector<128x384xf32>
    %c0_7 = arith.constant 0 : index
    %c0_8 = arith.constant 0 : index
    %7 = vector.load %arg4[%c0_7, %c0_8] : memref<1x384xf32, #tpu.memory_space<vmem>>, vector<1x384xf32>
    %cst_9 = arith.constant 0.000000e+00 : f32
    %8 = vector.broadcast %cst_9 : f32 to vector<4x128xf32>
    %9 = vector.extract_strided_slice %5 {offsets = [0, 0], sizes = [4, 384], strides = [1, 1]} : vector<32x384xf32> to vector<4x384xf32>
    %cst_10 = arith.constant dense<0.000000e+00> : vector<4x384xf32>
    %10 = tpu.matmul %8, %6, %cst_10 {dimension_numbers = #tpu.dot_dimension_numbers<[1], [0], [0], [1], [0, 0, 1, 1], [], []>} : vector<4x128xf32>, vector<128x384xf32>, vector<4x384xf32> -> vector<4x384xf32>
    %11 = vector.broadcast %7 : vector<1x384xf32> to vector<4x384xf32>
    %12 = arith.addf %10, %11 : vector<4x384xf32>
    %13 = vector.extract_strided_slice %9 {offsets = [0, 0], sizes = [4, 128], strides = [1, 1]} : vector<4x384xf32> to vector<4x128xf32>
    %14 = vector.extract_strided_slice %9 {offsets = [0, 128], sizes = [4, 128], strides = [1, 1]} : vector<4x384xf32> to vector<4x128xf32>
    %15 = vector.extract_strided_slice %9 {offsets = [0, 256], sizes = [4, 128], strides = [1, 1]} : vector<4x384xf32> to vector<4x128xf32>
    %16 = vector.extract_strided_slice %12 {offsets = [0, 0], sizes = [4, 128], strides = [1, 1]} : vector<4x384xf32> to vector<4x128xf32>
    %17 = vector.extract_strided_slice %12 {offsets = [0, 128], sizes = [4, 128], strides = [1, 1]} : vector<4x384xf32> to vector<4x128xf32>
    %18 = vector.extract_strided_slice %12 {offsets = [0, 256], sizes = [4, 128], strides = [1, 1]} : vector<4x384xf32> to vector<4x128xf32>
    %19 = arith.addf %13, %16 : vector<4x128xf32>
    %20 = arith.negf %19 : vector<4x128xf32>
    %21 = math.exp %20 : vector<4x128xf32>
    %cst_11 = arith.constant 1.000000e+00 : f32
    %22 = vector.broadcast %cst_11 : f32 to vector<4x128xf32>
    %23 = arith.addf %22, %21 : vector<4x128xf32>
    %24 = arith.divf %22, %23 : vector<4x128xf32>
    %25 = arith.addf %14, %17 : vector<4x128xf32>
    %26 = arith.negf %25 : vector<4x128xf32>
    %27 = math.exp %26 : vector<4x128xf32>
    %cst_12 = arith.constant 1.000000e+00 : f32
    %28 = vector.broadcast %cst_12 : f32 to vector<4x128xf32>
    %29 = arith.addf %28, %27 : vector<4x128xf32>
    %30 = arith.divf %28, %29 : vector<4x128xf32>
    %31 = arith.mulf %24, %18 : vector<4x128xf32>
    %32 = arith.addf %15, %31 : vector<4x128xf32>
    %33 = math.tanh %32 : vector<4x128xf32>
    %cst_13 = arith.constant 1.000000e+00 : f32
    %34 = vector.broadcast %cst_13 : f32 to vector<4x128xf32>
    %35 = arith.subf %34, %30 : vector<4x128xf32>
    %36 = arith.mulf %35, %33 : vector<4x128xf32>
    %37 = arith.mulf %30, %8 : vector<4x128xf32>
    %38 = arith.addf %36, %37 : vector<4x128xf32>
    %39 = vector.extract_strided_slice %5 {offsets = [4, 0], sizes = [4, 384], strides = [1, 1]} : vector<32x384xf32> to vector<4x384xf32>
    %cst_14 = arith.constant dense<0.000000e+00> : vector<4x384xf32>
    %40 = tpu.matmul %38, %6, %cst_14 {dimension_numbers = #tpu.dot_dimension_numbers<[1], [0], [0], [1], [0, 0, 1, 1], [], []>} : vector<4x128xf32>, vector<128x384xf32>, vector<4x384xf32> -> vector<4x384xf32>
    %41 = vector.broadcast %7 : vector<1x384xf32> to vector<4x384xf32>
    %42 = arith.addf %40, %41 : vector<4x384xf32>
    %43 = vector.extract_strided_slice %39 {offsets = [0, 0], sizes = [4, 128], strides = [1, 1]} : vector<4x384xf32> to vector<4x128xf32>
    %44 = vector.extract_strided_slice %39 {offsets = [0, 128], sizes = [4, 128], strides = [1, 1]} : vector<4x384xf32> to vector<4x128xf32>
    %45 = vector.extract_strided_slice %39 {offsets = [0, 256], sizes = [4, 128], strides = [1, 1]} : vector<4x384xf32> to vector<4x128xf32>
    %46 = vector.extract_strided_slice %42 {offsets = [0, 0], sizes = [4, 128], strides = [1, 1]} : vector<4x384xf32> to vector<4x128xf32>
    %47 = vector.extract_strided_slice %42 {offsets = [0, 128], sizes = [4, 128], strides = [1, 1]} : vector<4x384xf32> to vector<4x128xf32>
    %48 = vector.extract_strided_slice %42 {offsets = [0, 256], sizes = [4, 128], strides = [1, 1]} : vector<4x384xf32> to vector<4x128xf32>
    %49 = arith.addf %43, %46 : vector<4x128xf32>
    %50 = arith.negf %49 : vector<4x128xf32>
    %51 = math.exp %50 : vector<4x128xf32>
    %cst_15 = arith.constant 1.000000e+00 : f32
    %52 = vector.broadcast %cst_15 : f32 to vector<4x128xf32>
    %53 = arith.addf %52, %51 : vector<4x128xf32>
    %54 = arith.divf %52, %53 : vector<4x128xf32>
    %55 = arith.addf %44, %47 : vector<4x128xf32>
    %56 = arith.negf %55 : vector<4x128xf32>
    %57 = math.exp %56 : vector<4x128xf32>
    %cst_16 = arith.constant 1.000000e+00 : f32
    %58 = vector.broadcast %cst_16 : f32 to vector<4x128xf32>
    %59 = arith.addf %58, %57 : vector<4x128xf32>
    %60 = arith.divf %58, %59 : vector<4x128xf32>
    %61 = arith.mulf %54, %48 : vector<4x128xf32>
    %62 = arith.addf %45, %61 : vector<4x128xf32>
    %63 = math.tanh %62 : vector<4x128xf32>
    %cst_17 = arith.constant 1.000000e+00 : f32
    %64 = vector.broadcast %cst_17 : f32 to vector<4x128xf32>
    %65 = arith.subf %64, %60 : vector<4x128xf32>
    %66 = arith.mulf %65, %63 : vector<4x128xf32>
    %67 = arith.mulf %60, %38 : vector<4x128xf32>
    %68 = arith.addf %66, %67 : vector<4x128xf32>
    %69 = vector.extract_strided_slice %5 {offsets = [8, 0], sizes = [4, 384], strides = [1, 1]} : vector<32x384xf32> to vector<4x384xf32>
    %cst_18 = arith.constant dense<0.000000e+00> : vector<4x384xf32>
    %70 = tpu.matmul %68, %6, %cst_18 {dimension_numbers = #tpu.dot_dimension_numbers<[1], [0], [0], [1], [0, 0, 1, 1], [], []>} : vector<4x128xf32>, vector<128x384xf32>, vector<4x384xf32> -> vector<4x384xf32>
    %71 = vector.broadcast %7 : vector<1x384xf32> to vector<4x384xf32>
    %72 = arith.addf %70, %71 : vector<4x384xf32>
    %73 = vector.extract_strided_slice %69 {offsets = [0, 0], sizes = [4, 128], strides = [1, 1]} : vector<4x384xf32> to vector<4x128xf32>
    %74 = vector.extract_strided_slice %69 {offsets = [0, 128], sizes = [4, 128], strides = [1, 1]} : vector<4x384xf32> to vector<4x128xf32>
    %75 = vector.extract_strided_slice %69 {offsets = [0, 256], sizes = [4, 128], strides = [1, 1]} : vector<4x384xf32> to vector<4x128xf32>
    %76 = vector.extract_strided_slice %72 {offsets = [0, 0], sizes = [4, 128], strides = [1, 1]} : vector<4x384xf32> to vector<4x128xf32>
    %77 = vector.extract_strided_slice %72 {offsets = [0, 128], sizes = [4, 128], strides = [1, 1]} : vector<4x384xf32> to vector<4x128xf32>
    %78 = vector.extract_strided_slice %72 {offsets = [0, 256], sizes = [4, 128], strides = [1, 1]} : vector<4x384xf32> to vector<4x128xf32>
    %79 = arith.addf %73, %76 : vector<4x128xf32>
    %80 = arith.negf %79 : vector<4x128xf32>
    %81 = math.exp %80 : vector<4x128xf32>
    %cst_19 = arith.constant 1.000000e+00 : f32
    %82 = vector.broadcast %cst_19 : f32 to vector<4x128xf32>
    %83 = arith.addf %82, %81 : vector<4x128xf32>
    %84 = arith.divf %82, %83 : vector<4x128xf32>
    %85 = arith.addf %74, %77 : vector<4x128xf32>
    %86 = arith.negf %85 : vector<4x128xf32>
    %87 = math.exp %86 : vector<4x128xf32>
    %cst_20 = arith.constant 1.000000e+00 : f32
    %88 = vector.broadcast %cst_20 : f32 to vector<4x128xf32>
    %89 = arith.addf %88, %87 : vector<4x128xf32>
    %90 = arith.divf %88, %89 : vector<4x128xf32>
    %91 = arith.mulf %84, %78 : vector<4x128xf32>
    %92 = arith.addf %75, %91 : vector<4x128xf32>
    %93 = math.tanh %92 : vector<4x128xf32>
    %cst_21 = arith.constant 1.000000e+00 : f32
    %94 = vector.broadcast %cst_21 : f32 to vector<4x128xf32>
    %95 = arith.subf %94, %90 : vector<4x128xf32>
    %96 = arith.mulf %95, %93 : vector<4x128xf32>
    %97 = arith.mulf %90, %68 : vector<4x128xf32>
    %98 = arith.addf %96, %97 : vector<4x128xf32>
    %99 = vector.extract_strided_slice %5 {offsets = [12, 0], sizes = [4, 384], strides = [1, 1]} : vector<32x384xf32> to vector<4x384xf32>
    %cst_22 = arith.constant dense<0.000000e+00> : vector<4x384xf32>
    %100 = tpu.matmul %98, %6, %cst_22 {dimension_numbers = #tpu.dot_dimension_numbers<[1], [0], [0], [1], [0, 0, 1, 1], [], []>} : vector<4x128xf32>, vector<128x384xf32>, vector<4x384xf32> -> vector<4x384xf32>
    %101 = vector.broadcast %7 : vector<1x384xf32> to vector<4x384xf32>
    %102 = arith.addf %100, %101 : vector<4x384xf32>
    %103 = vector.extract_strided_slice %99 {offsets = [0, 0], sizes = [4, 128], strides = [1, 1]} : vector<4x384xf32> to vector<4x128xf32>
    %104 = vector.extract_strided_slice %99 {offsets = [0, 128], sizes = [4, 128], strides = [1, 1]} : vector<4x384xf32> to vector<4x128xf32>
    %105 = vector.extract_strided_slice %99 {offsets = [0, 256], sizes = [4, 128], strides = [1, 1]} : vector<4x384xf32> to vector<4x128xf32>
    %106 = vector.extract_strided_slice %102 {offsets = [0, 0], sizes = [4, 128], strides = [1, 1]} : vector<4x384xf32> to vector<4x128xf32>
    %107 = vector.extract_strided_slice %102 {offsets = [0, 128], sizes = [4, 128], strides = [1, 1]} : vector<4x384xf32> to vector<4x128xf32>
    %108 = vector.extract_strided_slice %102 {offsets = [0, 256], sizes = [4, 128], strides = [1, 1]} : vector<4x384xf32> to vector<4x128xf32>
    %109 = arith.addf %103, %106 : vector<4x128xf32>
    %110 = arith.negf %109 : vector<4x128xf32>
    %111 = math.exp %110 : vector<4x128xf32>
    %cst_23 = arith.constant 1.000000e+00 : f32
    %112 = vector.broadcast %cst_23 : f32 to vector<4x128xf32>
    %113 = arith.addf %112, %111 : vector<4x128xf32>
    %114 = arith.divf %112, %113 : vector<4x128xf32>
    %115 = arith.addf %104, %107 : vector<4x128xf32>
    %116 = arith.negf %115 : vector<4x128xf32>
    %117 = math.exp %116 : vector<4x128xf32>
    %cst_24 = arith.constant 1.000000e+00 : f32
    %118 = vector.broadcast %cst_24 : f32 to vector<4x128xf32>
    %119 = arith.addf %118, %117 : vector<4x128xf32>
    %120 = arith.divf %118, %119 : vector<4x128xf32>
    %121 = arith.mulf %114, %108 : vector<4x128xf32>
    %122 = arith.addf %105, %121 : vector<4x128xf32>
    %123 = math.tanh %122 : vector<4x128xf32>
    %cst_25 = arith.constant 1.000000e+00 : f32
    %124 = vector.broadcast %cst_25 : f32 to vector<4x128xf32>
    %125 = arith.subf %124, %120 : vector<4x128xf32>
    %126 = arith.mulf %125, %123 : vector<4x128xf32>
    %127 = arith.mulf %120, %98 : vector<4x128xf32>
    %128 = arith.addf %126, %127 : vector<4x128xf32>
    %129 = vector.extract_strided_slice %5 {offsets = [16, 0], sizes = [4, 384], strides = [1, 1]} : vector<32x384xf32> to vector<4x384xf32>
    %cst_26 = arith.constant dense<0.000000e+00> : vector<4x384xf32>
    %130 = tpu.matmul %128, %6, %cst_26 {dimension_numbers = #tpu.dot_dimension_numbers<[1], [0], [0], [1], [0, 0, 1, 1], [], []>} : vector<4x128xf32>, vector<128x384xf32>, vector<4x384xf32> -> vector<4x384xf32>
    %131 = vector.broadcast %7 : vector<1x384xf32> to vector<4x384xf32>
    %132 = arith.addf %130, %131 : vector<4x384xf32>
    %133 = vector.extract_strided_slice %129 {offsets = [0, 0], sizes = [4, 128], strides = [1, 1]} : vector<4x384xf32> to vector<4x128xf32>
    %134 = vector.extract_strided_slice %129 {offsets = [0, 128], sizes = [4, 128], strides = [1, 1]} : vector<4x384xf32> to vector<4x128xf32>
    %135 = vector.extract_strided_slice %129 {offsets = [0, 256], sizes = [4, 128], strides = [1, 1]} : vector<4x384xf32> to vector<4x128xf32>
    %136 = vector.extract_strided_slice %132 {offsets = [0, 0], sizes = [4, 128], strides = [1, 1]} : vector<4x384xf32> to vector<4x128xf32>
    %137 = vector.extract_strided_slice %132 {offsets = [0, 128], sizes = [4, 128], strides = [1, 1]} : vector<4x384xf32> to vector<4x128xf32>
    %138 = vector.extract_strided_slice %132 {offsets = [0, 256], sizes = [4, 128], strides = [1, 1]} : vector<4x384xf32> to vector<4x128xf32>
    %139 = arith.addf %133, %136 : vector<4x128xf32>
    %140 = arith.negf %139 : vector<4x128xf32>
    %141 = math.exp %140 : vector<4x128xf32>
    %cst_27 = arith.constant 1.000000e+00 : f32
    %142 = vector.broadcast %cst_27 : f32 to vector<4x128xf32>
    %143 = arith.addf %142, %141 : vector<4x128xf32>
    %144 = arith.divf %142, %143 : vector<4x128xf32>
    %145 = arith.addf %134, %137 : vector<4x128xf32>
    %146 = arith.negf %145 : vector<4x128xf32>
    %147 = math.exp %146 : vector<4x128xf32>
    %cst_28 = arith.constant 1.000000e+00 : f32
    %148 = vector.broadcast %cst_28 : f32 to vector<4x128xf32>
    %149 = arith.addf %148, %147 : vector<4x128xf32>
    %150 = arith.divf %148, %149 : vector<4x128xf32>
    %151 = arith.mulf %144, %138 : vector<4x128xf32>
    %152 = arith.addf %135, %151 : vector<4x128xf32>
    %153 = math.tanh %152 : vector<4x128xf32>
    %cst_29 = arith.constant 1.000000e+00 : f32
    %154 = vector.broadcast %cst_29 : f32 to vector<4x128xf32>
    %155 = arith.subf %154, %150 : vector<4x128xf32>
    %156 = arith.mulf %155, %153 : vector<4x128xf32>
    %157 = arith.mulf %150, %128 : vector<4x128xf32>
    %158 = arith.addf %156, %157 : vector<4x128xf32>
    %159 = vector.extract_strided_slice %5 {offsets = [20, 0], sizes = [4, 384], strides = [1, 1]} : vector<32x384xf32> to vector<4x384xf32>
    %cst_30 = arith.constant dense<0.000000e+00> : vector<4x384xf32>
    %160 = tpu.matmul %158, %6, %cst_30 {dimension_numbers = #tpu.dot_dimension_numbers<[1], [0], [0], [1], [0, 0, 1, 1], [], []>} : vector<4x128xf32>, vector<128x384xf32>, vector<4x384xf32> -> vector<4x384xf32>
    %161 = vector.broadcast %7 : vector<1x384xf32> to vector<4x384xf32>
    %162 = arith.addf %160, %161 : vector<4x384xf32>
    %163 = vector.extract_strided_slice %159 {offsets = [0, 0], sizes = [4, 128], strides = [1, 1]} : vector<4x384xf32> to vector<4x128xf32>
    %164 = vector.extract_strided_slice %159 {offsets = [0, 128], sizes = [4, 128], strides = [1, 1]} : vector<4x384xf32> to vector<4x128xf32>
    %165 = vector.extract_strided_slice %159 {offsets = [0, 256], sizes = [4, 128], strides = [1, 1]} : vector<4x384xf32> to vector<4x128xf32>
    %166 = vector.extract_strided_slice %162 {offsets = [0, 0], sizes = [4, 128], strides = [1, 1]} : vector<4x384xf32> to vector<4x128xf32>
    %167 = vector.extract_strided_slice %162 {offsets = [0, 128], sizes = [4, 128], strides = [1, 1]} : vector<4x384xf32> to vector<4x128xf32>
    %168 = vector.extract_strided_slice %162 {offsets = [0, 256], sizes = [4, 128], strides = [1, 1]} : vector<4x384xf32> to vector<4x128xf32>
    %169 = arith.addf %163, %166 : vector<4x128xf32>
    %170 = arith.negf %169 : vector<4x128xf32>
    %171 = math.exp %170 : vector<4x128xf32>
    %cst_31 = arith.constant 1.000000e+00 : f32
    %172 = vector.broadcast %cst_31 : f32 to vector<4x128xf32>
    %173 = arith.addf %172, %171 : vector<4x128xf32>
    %174 = arith.divf %172, %173 : vector<4x128xf32>
    %175 = arith.addf %164, %167 : vector<4x128xf32>
    %176 = arith.negf %175 : vector<4x128xf32>
    %177 = math.exp %176 : vector<4x128xf32>
    %cst_32 = arith.constant 1.000000e+00 : f32
    %178 = vector.broadcast %cst_32 : f32 to vector<4x128xf32>
    %179 = arith.addf %178, %177 : vector<4x128xf32>
    %180 = arith.divf %178, %179 : vector<4x128xf32>
    %181 = arith.mulf %174, %168 : vector<4x128xf32>
    %182 = arith.addf %165, %181 : vector<4x128xf32>
    %183 = math.tanh %182 : vector<4x128xf32>
    %cst_33 = arith.constant 1.000000e+00 : f32
    %184 = vector.broadcast %cst_33 : f32 to vector<4x128xf32>
    %185 = arith.subf %184, %180 : vector<4x128xf32>
    %186 = arith.mulf %185, %183 : vector<4x128xf32>
    %187 = arith.mulf %180, %158 : vector<4x128xf32>
    %188 = arith.addf %186, %187 : vector<4x128xf32>
    %189 = vector.extract_strided_slice %5 {offsets = [24, 0], sizes = [4, 384], strides = [1, 1]} : vector<32x384xf32> to vector<4x384xf32>
    %cst_34 = arith.constant dense<0.000000e+00> : vector<4x384xf32>
    %190 = tpu.matmul %188, %6, %cst_34 {dimension_numbers = #tpu.dot_dimension_numbers<[1], [0], [0], [1], [0, 0, 1, 1], [], []>} : vector<4x128xf32>, vector<128x384xf32>, vector<4x384xf32> -> vector<4x384xf32>
    %191 = vector.broadcast %7 : vector<1x384xf32> to vector<4x384xf32>
    %192 = arith.addf %190, %191 : vector<4x384xf32>
    %193 = vector.extract_strided_slice %189 {offsets = [0, 0], sizes = [4, 128], strides = [1, 1]} : vector<4x384xf32> to vector<4x128xf32>
    %194 = vector.extract_strided_slice %189 {offsets = [0, 128], sizes = [4, 128], strides = [1, 1]} : vector<4x384xf32> to vector<4x128xf32>
    %195 = vector.extract_strided_slice %189 {offsets = [0, 256], sizes = [4, 128], strides = [1, 1]} : vector<4x384xf32> to vector<4x128xf32>
    %196 = vector.extract_strided_slice %192 {offsets = [0, 0], sizes = [4, 128], strides = [1, 1]} : vector<4x384xf32> to vector<4x128xf32>
    %197 = vector.extract_strided_slice %192 {offsets = [0, 128], sizes = [4, 128], strides = [1, 1]} : vector<4x384xf32> to vector<4x128xf32>
    %198 = vector.extract_strided_slice %192 {offsets = [0, 256], sizes = [4, 128], strides = [1, 1]} : vector<4x384xf32> to vector<4x128xf32>
    %199 = arith.addf %193, %196 : vector<4x128xf32>
    %200 = arith.negf %199 : vector<4x128xf32>
    %201 = math.exp %200 : vector<4x128xf32>
    %cst_35 = arith.constant 1.000000e+00 : f32
    %202 = vector.broadcast %cst_35 : f32 to vector<4x128xf32>
    %203 = arith.addf %202, %201 : vector<4x128xf32>
    %204 = arith.divf %202, %203 : vector<4x128xf32>
    %205 = arith.addf %194, %197 : vector<4x128xf32>
    %206 = arith.negf %205 : vector<4x128xf32>
    %207 = math.exp %206 : vector<4x128xf32>
    %cst_36 = arith.constant 1.000000e+00 : f32
    %208 = vector.broadcast %cst_36 : f32 to vector<4x128xf32>
    %209 = arith.addf %208, %207 : vector<4x128xf32>
    %210 = arith.divf %208, %209 : vector<4x128xf32>
    %211 = arith.mulf %204, %198 : vector<4x128xf32>
    %212 = arith.addf %195, %211 : vector<4x128xf32>
    %213 = math.tanh %212 : vector<4x128xf32>
    %cst_37 = arith.constant 1.000000e+00 : f32
    %214 = vector.broadcast %cst_37 : f32 to vector<4x128xf32>
    %215 = arith.subf %214, %210 : vector<4x128xf32>
    %216 = arith.mulf %215, %213 : vector<4x128xf32>
    %217 = arith.mulf %210, %188 : vector<4x128xf32>
    %218 = arith.addf %216, %217 : vector<4x128xf32>
    %219 = vector.extract_strided_slice %5 {offsets = [28, 0], sizes = [4, 384], strides = [1, 1]} : vector<32x384xf32> to vector<4x384xf32>
    %cst_38 = arith.constant dense<0.000000e+00> : vector<4x384xf32>
    %220 = tpu.matmul %218, %6, %cst_38 {dimension_numbers = #tpu.dot_dimension_numbers<[1], [0], [0], [1], [0, 0, 1, 1], [], []>} : vector<4x128xf32>, vector<128x384xf32>, vector<4x384xf32> -> vector<4x384xf32>
    %221 = vector.broadcast %7 : vector<1x384xf32> to vector<4x384xf32>
    %222 = arith.addf %220, %221 : vector<4x384xf32>
    %223 = vector.extract_strided_slice %219 {offsets = [0, 0], sizes = [4, 128], strides = [1, 1]} : vector<4x384xf32> to vector<4x128xf32>
    %224 = vector.extract_strided_slice %219 {offsets = [0, 128], sizes = [4, 128], strides = [1, 1]} : vector<4x384xf32> to vector<4x128xf32>
    %225 = vector.extract_strided_slice %219 {offsets = [0, 256], sizes = [4, 128], strides = [1, 1]} : vector<4x384xf32> to vector<4x128xf32>
    %226 = vector.extract_strided_slice %222 {offsets = [0, 0], sizes = [4, 128], strides = [1, 1]} : vector<4x384xf32> to vector<4x128xf32>
    %227 = vector.extract_strided_slice %222 {offsets = [0, 128], sizes = [4, 128], strides = [1, 1]} : vector<4x384xf32> to vector<4x128xf32>
    %228 = vector.extract_strided_slice %222 {offsets = [0, 256], sizes = [4, 128], strides = [1, 1]} : vector<4x384xf32> to vector<4x128xf32>
    %229 = arith.addf %223, %226 : vector<4x128xf32>
    %230 = arith.negf %229 : vector<4x128xf32>
    %231 = math.exp %230 : vector<4x128xf32>
    %cst_39 = arith.constant 1.000000e+00 : f32
    %232 = vector.broadcast %cst_39 : f32 to vector<4x128xf32>
    %233 = arith.addf %232, %231 : vector<4x128xf32>
    %234 = arith.divf %232, %233 : vector<4x128xf32>
    %235 = arith.addf %224, %227 : vector<4x128xf32>
    %236 = arith.negf %235 : vector<4x128xf32>
    %237 = math.exp %236 : vector<4x128xf32>
    %cst_40 = arith.constant 1.000000e+00 : f32
    %238 = vector.broadcast %cst_40 : f32 to vector<4x128xf32>
    %239 = arith.addf %238, %237 : vector<4x128xf32>
    %240 = arith.divf %238, %239 : vector<4x128xf32>
    %241 = arith.mulf %234, %228 : vector<4x128xf32>
    %242 = arith.addf %225, %241 : vector<4x128xf32>
    %243 = math.tanh %242 : vector<4x128xf32>
    %cst_41 = arith.constant 1.000000e+00 : f32
    %244 = vector.broadcast %cst_41 : f32 to vector<4x128xf32>
    %245 = arith.subf %244, %240 : vector<4x128xf32>
    %246 = arith.mulf %245, %243 : vector<4x128xf32>
    %247 = arith.mulf %240, %218 : vector<4x128xf32>
    %248 = arith.addf %246, %247 : vector<4x128xf32>
    %c0_42 = arith.constant 0 : index
    %c0_43 = arith.constant 0 : index
    %249 = vector.load %arg5[%c0_42, %c0_43] : memref<4x128xf32, #tpu.memory_space<vmem>>, vector<4x128xf32>
    tpu.vector_store %arg5[%c0_42, %c0_43], %248 {strides = array<i32>} : memref<4x128xf32, #tpu.memory_space<vmem>>, vector<4x128xf32>,
    return
  }
}

</mosaic_0001>

<llo_original>
// kernel: tpu_custom_call.1
$region0: #{tpu_custom_call.1}
  #allocation0 [shape = 'u32[]', space=smem, size = 0x4, offset = 0x4, fixed_abs, tag = 'smem constant byte address 0x4 - core index']
  #allocation1 [shape = 'u32[144,128]{1,0:T(1,128)}', space=vmem, size = 0x12000, scoped, tag = 'internal scratch']
  %s0 = inlined_call_operand.vmem [shape: f32[32,16], index: 0, kind: input, shape index: {}]
  %s1 = inlined_call_operand.vmem [shape: f32[16,384], index: 1, kind: input, shape index: {}]
  %s2 = inlined_call_operand.hbm [shape: f32[128,384], index: 2, kind: input, shape index: {}]
  %s3 = inlined_call_operand.vmem [shape: f32[1,384], index: 3, kind: input, shape index: {}]
  %s4 = inlined_call_operand.vmem [shape: f32[1,384], index: 4, kind: input, shape index: {}]
  %s5 = inlined_call_operand.hbm [shape: f32[4,128], index: 5, kind: output, shape index: {}]
  %s6 = sld [smem:[#allocation0]]
  $region34: #{tpu_custom_call.1} parent=0
    _
  %s8 = ssub.s32 1, %s6
  %s9 = scalar_select 0, %s8, %s6
  $region1: #{tpu_custom_call.1} parent=0
    #allocation2 [shape = 'u8[196608]{0}', space=vmem, size = 0x30000, scoped, tag = 'input window, operand 2, single buffered']
    #allocation3 [shape = 's32[1]{0}', space=sflag, size = 0x4, scoped, tag = 'scoped memory for tpu_custom_call.1']
    #allocation4 [shape = 's32[1]{0}', space=sflag, size = 0x4, scoped, tag = 'scoped memory for tpu_custom_call.1']
    #allocation5 [shape = 'u8[2048]{0}', space=vmem, size = 0x800, scoped, tag = 'output window, operand 0, single buffered']
    %10 = vsyncpa [#allocation3], 0
    %11 = vsyncpa [#allocation4], 0
    // Predicated region
    $region2: #{tpu_custom_call.1} parent=1 // pred_check
      _
    $region3: #{tpu_custom_call.1} parent=1 // pred_check_branch
      %13 = sbr.rel (0) target = $region5
    $region4: #{tpu_custom_call.1} parent=1 // pred_region
      _
    $region5: #{tpu_custom_call.1} parent=1 // pred_fallthru
      _
    // Predicated region
    $region6: #{tpu_custom_call.1} parent=1 // pred_check
      _
    $region7: #{tpu_custom_call.1} parent=1 // pred_check_branch
      %15 = sbr.rel (0) target = $region9
    $region8: #{tpu_custom_call.1} parent=1 // pred_region
      _
    $region9: #{tpu_custom_call.1} parent=1 // pred_fallthru
      _
    // Predicated region
    $region10: #{tpu_custom_call.1} parent=1 // pred_check
      _
    $region11: #{tpu_custom_call.1} parent=1 // pred_check_branch
      %17 = sbr.rel (0) target = $region13
    $region12: #{tpu_custom_call.1} parent=1 // pred_region
      %s19 = ssub.s32 6144, 6144
      %20 = vsyncadd [#allocation3], %s19
      %s21 = sshll.u32 [#allocation2], 4
      %s22 = int_to_ptr.vmem [resolvable:$true] %s21
      %27 = dma.hbm_to_vmem [thread:$0]  %s2, 6144, %s22, [#allocation3], 384, 384, 24
    $region13: #{tpu_custom_call.1} parent=1 // pred_fallthru
      _
    // Predicated region
    $region14: #{tpu_custom_call.1} parent=1 // pred_check
      _
    $region15: #{tpu_custom_call.1} parent=1 // pred_check_branch
      %29 = sbr.rel (0) target = $region17
    $region16: #{tpu_custom_call.1} parent=1 // pred_region
      _
    $region17: #{tpu_custom_call.1} parent=1 // pred_fallthru
      _
    // Predicated region
    $region18: #{tpu_custom_call.1} parent=1 // pred_check
      _
    $region19: #{tpu_custom_call.1} parent=1 // pred_check_branch
      %31 = sbr.rel (0) target = $region21
    $region20: #{tpu_custom_call.1} parent=1 // pred_region
      _
    $region21: #{tpu_custom_call.1} parent=1 // pred_fallthru
      _
    // Predicated region
    $region22: #{tpu_custom_call.1} parent=1 // pred_check
      _
    $region23: #{tpu_custom_call.1} parent=1 // pred_check_branch
      %33 = sbr.rel (0) target = $region25
    $region24: #{tpu_custom_call.1} parent=1 // pred_region
      %34 = dma.done [#allocation3], 6144
    $region25: #{tpu_custom_call.1} parent=1 // pred_fallthru
      _
    %v35 = vld [vmem:[%s0] sm:$0xff]
    %v36 = vld [vmem:[%s0 + $0x8] sm:$0xff]
    %v37 = vld [vmem:[%s0 + $0x10] sm:$0xff]
    %v38 = vld [vmem:[%s0 + $0x18] sm:$0xff]
    %v39 = vld [vmem:[%s1] sm:$0xff]
    %v40 = vld [vmem:[%s1 + $0x8] sm:$0xff]
    %v41 = vld [vmem:[%s1 + $0x10] sm:$0xff]
    %v42 = vld [vmem:[%s1 + $0x18] sm:$0xff]
    %v43 = vld [vmem:[%s1 + $0x20] sm:$0xff]
    %v44 = vld [vmem:[%s1 + $0x28] sm:$0xff]
    %v45 = vld [vmem:[%s3] sm:$0x7]
    %v47 = vlaneseq
    %v48 = vshrl.u32 %v47, 7
    %v49 = vsub.s32 0, %v48
    %v50 = vrot.slane %v45, %v49
    %v51 = vlaneseq
    %v52 = vshrl.u32 %v51, 7
    %v53 = vsub.s32 1, %v52
    %v54 = vrot.slane %v45, %v53
    %v55 = vlaneseq
    %v56 = vshrl.u32 %v55, 7
    %v57 = vsub.s32 2, %v56
    %v58 = vrot.slane %v45, %v57
    %vm62 = vcmask 130048
    %v64 = vsel %vm62, %v35, 0
    %v67 = vsel %vm62, %v36, 0
    %v70 = vsel %vm62, %v37, 0
    %v73 = vsel %vm62, %v38, 0
    %75 = vmatprep.subr.mxu0 0.0
    %76 = vmatpush1.msra.mxu0 0.0
    %77 = vmatprep.subr.mxu0 0.0
    %78 = vmatpush1.msra.mxu0 0.0
    %79 = vmatprep.subr.mxu0 0.0
    %80 = vmatpush1.msra.mxu0 0.0
    %81 = vmatprep.subr.mxu0 0.0
    %82 = vmatpush1.msra.mxu0 0.0
    %83 = vmatprep.subr.mxu0 0.0
    %84 = vmatpush1.msra.mxu0 0.0
    %85 = vmatprep.subr.mxu0 0.0
    %86 = vmatpush1.msra.mxu0 0.0
    %87 = vmatprep.subr.mxu0 0.0
    %88 = vmatpush1.msra.mxu0 0.0
    %89 = vmatprep.subr.mxu0 0.0
    %90 = vmatpush1.msra.mxu0 0.0
    %91 = vmatprep.subr.mxu0 0.0
    %92 = vmatpush1.msra.mxu0 0.0
    %93 = vmatprep.subr.mxu0 0.0
    %94 = vmatpush1.msra.mxu0 0.0
    %95 = vmatprep.subr.mxu0 0.0
    %96 = vmatpush1.msra.mxu0 0.0
    %97 = vmatprep.subr.mxu0 0.0
    %98 = vmatpush1.msra.mxu0 0.0
    %99 = vmatprep.subr.mxu0 0.0
    %100 = vmatpush1.msra.mxu0 0.0
    %101 = vmatprep.subr.mxu0 0.0
    %102 = vmatpush1.msra.mxu0 0.0
    %103 = vmatprep.subr.mxu0 %v43
    %104 = vmatpush1.msra.mxu0 %v42
    %105 = vmatprep.subr.mxu0 %v40
    %106 = vmatpush1.msra.mxu0 %v39
    %107 = vmatprep.subr.mxu0 0.0
    %108 = vmatpush2.msra.mxu0 0.0
    %109 = vmatprep.subr.mxu0 0.0
    %110 = vmatpush2.msra.mxu0 0.0
    %111 = vmatprep.subr.mxu0 0.0
    %112 = vmatpush2.msra.mxu0 0.0
    %113 = vmatprep.subr.mxu0 0.0
    %114 = vmatpush2.msra.mxu0 0.0
    %115 = vmatprep.subr.mxu0 0.0
    %116 = vmatpush2.msra.mxu0 0.0
    %117 = vmatprep.subr.mxu0 0.0
    %118 = vmatpush2.msra.mxu0 0.0
    %119 = vmatprep.subr.mxu0 0.0
    %120 = vmatpush2.msra.mxu0 0.0
    %121 = vmatprep.subr.mxu0 0.0
    %122 = vmatpush2.msra.mxu0 0.0
    %123 = vmatprep.subr.mxu0 0.0
    %124 = vmatpush2.msra.mxu0 0.0
    %125 = vmatprep.subr.mxu0 0.0
    %126 = vmatpush2.msra.mxu0 0.0
    %127 = vmatprep.subr.mxu0 0.0
    %128 = vmatpush2.msra.mxu0 0.0
    %129 = vmatprep.subr.mxu0 0.0
    %130 = vmatpush2.msra.mxu0 0.0
    %131 = vmatprep.subr.mxu0 0.0
    %132 = vmatpush2.msra.mxu0 0.0
    %133 = vmatprep.subr.mxu0 0.0
    %134 = vmatpush2.msra.mxu0 0.0
    %135 = vmatprep.subr.mxu0 0.0
    %136 = vmatpush2.msra.mxu0 0.0
    %137 = vmatprep.subr.mxu0 0.0
    %138 = vmatpush2.msra.mxu0 0.0
    %139 = vmatprep.mubr.f32.mxu0 0.0
    %140 = vmatmul.mubr.f32.gmra.mxu0 %v64
    %v141 = vpop.f32.mrf.mxu0
    %v142 = vadd.f32 %v50, %v141
    %v143 = vpop.f32.mrf.mxu0
    %v144 = vadd.f32 %v54, %v143
    %145 = vmatprep.mubr.f32.mxu0 0.0
    %146 = vmatmul.mubr.f32.gmra.mxu0 %v67
    %v147 = vpop.f32.mrf.mxu0
    %v148 = vadd.f32 %v50, %v147
    %v149 = vpop.f32.mrf.mxu0
    %v150 = vadd.f32 %v54, %v149
    %151 = vmatprep.mubr.f32.mxu0 0.0
    %152 = vmatmul.mubr.f32.gmra.mxu0 %v70
    %v153 = vpop.f32.mrf.mxu0
    %v154 = vadd.f32 %v50, %v153
    %v155 = vpop.f32.mrf.mxu0
    %v156 = vadd.f32 %v54, %v155
    %157 = vmatprep.mubr.f32.mxu0 0.0
    %158 = vmatmul.mubr.f32.gmra.mxu0 %v73
    %v159 = vpop.f32.mrf.mxu0
    %v160 = vadd.f32 %v50, %v159
    %v161 = vpop.f32.mrf.mxu0
    %v162 = vadd.f32 %v54, %v161
    %163 = vdwg.mxu0
    %164 = vmatprep.subr.mxu0 0.0
    %165 = vmatpush1.msra.mxu0 0.0
    %166 = vmatprep.subr.mxu0 0.0
    %167 = vmatpush1.msra.mxu0 0.0
    %168 = vmatprep.subr.mxu0 0.0
    %169 = vmatpush1.msra.mxu0 0.0
    %170 = vmatprep.subr.mxu0 0.0
    %171 = vmatpush1.msra.mxu0 0.0
    %172 = vmatprep.subr.mxu0 0.0
    %173 = vmatpush1.msra.mxu0 0.0
    %174 = vmatprep.subr.mxu0 0.0
    %175 = vmatpush1.msra.mxu0 0.0
    %176 = vmatprep.subr.mxu0 0.0
    %177 = vmatpush1.msra.mxu0 0.0
    %178 = vmatprep.subr.mxu0 0.0
    %179 = vmatpush1.msra.mxu0 0.0
    %180 = vmatprep.subr.mxu0 0.0
    %181 = vmatpush1.msra.mxu0 0.0
    %182 = vmatprep.subr.mxu0 0.0
    %183 = vmatpush1.msra.mxu0 0.0
    %184 = vmatprep.subr.mxu0 0.0
    %185 = vmatpush1.msra.mxu0 0.0
    %186 = vmatprep.subr.mxu0 0.0
    %187 = vmatpush1.msra.mxu0 0.0
    %188 = vmatprep.subr.mxu0 0.0
    %189 = vmatpush1.msra.mxu0 0.0
    %190 = vmatprep.subr.mxu0 0.0
    %191 = vmatpush1.msra.mxu0 0.0
    %192 = vmatprep.subr.mxu0 0.0
    %193 = vmatpush1.msra.mxu0 %v44
    %194 = vmatprep.subr.mxu0 0.0
    %195 = vmatpush1.msra.mxu0 %v41
    %196 = vmatprep.subr.mxu0 0.0
    %197 = vmatpush2.msra.mxu0 0.0
    %198 = vmatprep.subr.mxu0 0.0
    %199 = vmatpush2.msra.mxu0 0.0
    %200 = vmatprep.subr.mxu0 0.0
    %201 = vmatpush2.msra.mxu0 0.0
    %202 = vmatprep.subr.mxu0 0.0
    %203 = vmatpush2.msra.mxu0 0.0
    %204 = vmatprep.subr.mxu0 0.0
    %205 = vmatpush2.msra.mxu0 0.0
    %206 = vmatprep.subr.mxu0 0.0
    %207 = vmatpush2.msra.mxu0 0.0
    %208 = vmatprep.subr.mxu0 0.0
    %209 = vmatpush2.msra.mxu0 0.0
    %210 = vmatprep.subr.mxu0 0.0
    %211 = vmatpush2.msra.mxu0 0.0
    %212 = vmatprep.subr.mxu0 0.0
    %213 = vmatpush2.msra.mxu0 0.0
    %214 = vmatprep.subr.mxu0 0.0
    %215 = vmatpush2.msra.mxu0 0.0
    %216 = vmatprep.subr.mxu0 0.0
    %217 = vmatpush2.msra.mxu0 0.0
    %218 = vmatprep.subr.mxu0 0.0
    %219 = vmatpush2.msra.mxu0 0.0
    %220 = vmatprep.subr.mxu0 0.0
    %221 = vmatpush2.msra.mxu0 0.0
    %222 = vmatprep.subr.mxu0 0.0
    %223 = vmatpush2.msra.mxu0 0.0
    %224 = vmatprep.subr.mxu0 0.0
    %225 = vmatpush2.msra.mxu0 0.0
    %226 = vmatprep.subr.mxu0 0.0
    %227 = vmatpush2.msra.mxu0 0.0
    %228 = vmatprep.mubr.f32.mxu0 0.0
    %229 = vmatmul.mubr.f32.gmra.mxu0 %v64
    %v230 = vpop.f32.mrf.mxu0
    %v231 = vadd.f32 %v58, %v230
    %v232 = vpop.f32.mrf.mxu0
    %233 = vmatprep.mubr.f32.mxu0 0.0
    %234 = vmatmul.mubr.f32.gmra.mxu0 %v67
    %v235 = vpop.f32.mrf.mxu0
    %v236 = vadd.f32 %v58, %v235
    %v237 = vpop.f32.mrf.mxu0
    %238 = vmatprep.mubr.f32.mxu0 0.0
    %239 = vmatmul.mubr.f32.gmra.mxu0 %v70
    %v240 = vpop.f32.mrf.mxu0
    %v241 = vadd.f32 %v58, %v240
    %v242 = vpop.f32.mrf.mxu0
    %243 = vmatprep.mubr.f32.mxu0 0.0
    %244 = vmatmul.mubr.f32.gmra.mxu0 %v73
    %v245 = vpop.f32.mrf.mxu0
    %v246 = vadd.f32 %v58, %v245
    %v247 = vpop.f32.mrf.mxu0
    %248 = vdwg.mxu0
    %v249 = vld [vmem:[#allocation2] sm:$0xff]
    %v250 = vld [vmem:[#allocation2 + $0x8] sm:$0xff]
    %v251 = vld [vmem:[#allocation2 + $0x10] sm:$0xff]
    %v252 = vld [vmem:[#allocation2 + $0x18] sm:$0xff]
    %v253 = vld [vmem:[#allocation2 + $0x20] sm:$0xff]
    %v254 = vld [vmem:[#allocation2 + $0x28] sm:$0xff]
    %v255 = vld [vmem:[#allocation2 + $0x30] sm:$0xff]
    %v256 = vld [vmem:[#allocation2 + $0x38] sm:$0xff]
    %v257 = vld [vmem:[#allocation2 + $0x40] sm:$0xff]
    %v258 = vld [vmem:[#allocation2 + $0x48] sm:$0xff]
    %v259 = vld [vmem:[#allocation2 + $0x50] sm:$0xff]
    %v260 = vld [vmem:[#allocation2 + $0x58] sm:$0xff]
    %v261 = vld [vmem:[#allocation2 + $0x60] sm:$0xff]
    %v262 = vld [vmem:[#allocation2 + $0x68] sm:$0xff]
    %v263 = vld [vmem:[#allocation2 + $0x70] sm:$0xff]
    %v264 = vld [vmem:[#allocation2 + $0x78] sm:$0xff]
    %v265 = vld [vmem:[#allocation2 + $0x80] sm:$0xff]
    %v266 = vld [vmem:[#allocation2 + $0x88] sm:$0xff]
    %v267 = vld [vmem:[#allocation2 + $0x90] sm:$0xff]
    %v268 = vld [vmem:[#allocation2 + $0x98] sm:$0xff]
    %v269 = vld [vmem:[#allocation2 + $0xa0] sm:$0xff]
    %v270 = vld [vmem:[#allocation2 + $0xa8] sm:$0xff]
    %v271 = vld [vmem:[#allocation2 + $0xb0] sm:$0xff]
    %v272 = vld [vmem:[#allocation2 + $0xb8] sm:$0xff]
    %v273 = vld [vmem:[#allocation2 + $0xc0] sm:$0xff]
    %v274 = vld [vmem:[#allocation2 + $0xc8] sm:$0xff]
    %v275 = vld [vmem:[#allocation2 + $0xd0] sm:$0xff]
    %v276 = vld [vmem:[#allocation2 + $0xd8] sm:$0xff]
    %v277 = vld [vmem:[#allocation2 + $0xe0] sm:$0xff]
    %v278 = vld [vmem:[#allocation2 + $0xe8] sm:$0xff]
    %v279 = vld [vmem:[#allocation2 + $0xf0] sm:$0xff]
    %v280 = vld [vmem:[#allocation2 + $0xf8] sm:$0xff]
    %v281 = vld [vmem:[#allocation2 + $0x100] sm:$0xff]
    %v282 = vld [vmem:[#allocation2 + $0x108] sm:$0xff]
    %v283 = vld [vmem:[#allocation2 + $0x110] sm:$0xff]
    %v284 = vld [vmem:[#allocation2 + $0x118] sm:$0xff]
    %v285 = vld [vmem:[#allocation2 + $0x120] sm:$0xff]
    %v286 = vld [vmem:[#allocation2 + $0x128] sm:$0xff]
    %v287 = vld [vmem:[#allocation2 + $0x130] sm:$0xff]
    %v288 = vld [vmem:[#allocation2 + $0x138] sm:$0xff]
    %v289 = vld [vmem:[#allocation2 + $0x140] sm:$0xff]
    %v290 = vld [vmem:[#allocation2 + $0x148] sm:$0xff]
    %v291 = vld [vmem:[#allocation2 + $0x150] sm:$0xff]
    %v292 = vld [vmem:[#allocation2 + $0x158] sm:$0xff]
    %v293 = vld [vmem:[#allocation2 + $0x160] sm:$0xff]
    %v294 = vld [vmem:[#allocation2 + $0x168] sm:$0xff]
    %v295 = vld [vmem:[#allocation2 + $0x170] sm:$0xff]
    %v296 = vld [vmem:[#allocation2 + $0x178] sm:$0xff]
    %v297 = vld [vmem:[%s4] sm:$0x7]
    %v299 = vlaneseq
    %v300 = vshrl.u32 %v299, 7
    %v301 = vsub.s32 0, %v300
    %v302 = vrot.slane %v297, %v301
    %v303 = vlaneseq
    %v304 = vshrl.u32 %v303, 7
    %v305 = vsub.s32 1, %v304
    %v306 = vrot.slane %v297, %v305
    %v307 = vlaneseq
    %v308 = vshrl.u32 %v307, 7
    %v309 = vsub.s32 2, %v308
    %v310 = vrot.slane %v297, %v309
    %314 = vmatprep.subr.mxu0 %v295
    %315 = vmatpush1.msra.mxu0 %v294
    %316 = vmatprep.subr.mxu0 %v292
    %317 = vmatpush1.msra.mxu0 %v291
    %318 = vmatprep.subr.mxu0 %v289
    %319 = vmatpush1.msra.mxu0 %v288
    %320 = vmatprep.subr.mxu0 %v286
    %321 = vmatpush1.msra.mxu0 %v285
    %322 = vmatprep.subr.mxu0 %v283
    %323 = vmatpush1.msra.mxu0 %v282
    %324 = vmatprep.subr.mxu0 %v280
    %325 = vmatpush1.msra.mxu0 %v279
    %326 = vmatprep.subr.mxu0 %v277
    %327 = vmatpush1.msra.mxu0 %v276
    %328 = vmatprep.subr.mxu0 %v274
    %329 = vmatpush1.msra.mxu0 %v273
    %330 = vmatprep.subr.mxu0 %v271
    %331 = vmatpush1.msra.mxu0 %v270
    %332 = vmatprep.subr.mxu0 %v268
    %333 = vmatpush1.msra.mxu0 %v267
    %334 = vmatprep.subr.mxu0 %v265
    %335 = vmatpush1.msra.mxu0 %v264
    %336 = vmatprep.subr.mxu0 %v262
    %337 = vmatpush1.msra.mxu0 %v261
    %338 = vmatprep.subr.mxu0 %v259
    %339 = vmatpush1.msra.mxu0 %v258
    %340 = vmatprep.subr.mxu0 %v256
    %341 = vmatpush1.msra.mxu0 %v255
    %342 = vmatprep.subr.mxu0 %v253
    %343 = vmatpush1.msra.mxu0 %v252
    %344 = vmatprep.subr.mxu0 %v250
    %345 = vmatpush1.msra.mxu0 %v249
    %346 = vmatprep.subr.mxu0 0.0
    %347 = vmatpush2.msra.mxu0 0.0
    %348 = vmatprep.subr.mxu0 0.0
    %349 = vmatpush2.msra.mxu0 0.0
    %350 = vmatprep.subr.mxu0 0.0
    %351 = vmatpush2.msra.mxu0 0.0
    %352 = vmatprep.subr.mxu0 0.0
    %353 = vmatpush2.msra.mxu0 0.0
    %354 = vmatprep.subr.mxu0 0.0
    %355 = vmatpush2.msra.mxu0 0.0
    %356 = vmatprep.subr.mxu0 0.0
    %357 = vmatpush2.msra.mxu0 0.0
    %358 = vmatprep.subr.mxu0 0.0
    %359 = vmatpush2.msra.mxu0 0.0
    %360 = vmatprep.subr.mxu0 0.0
    %361 = vmatpush2.msra.mxu0 0.0
    %362 = vmatprep.subr.mxu0 0.0
    %363 = vmatpush2.msra.mxu0 0.0
    %364 = vmatprep.subr.mxu0 0.0
    %365 = vmatpush2.msra.mxu0 0.0
    %366 = vmatprep.subr.mxu0 0.0
    %367 = vmatpush2.msra.mxu0 0.0
    %368 = vmatprep.subr.mxu0 0.0
    %369 = vmatpush2.msra.mxu0 0.0
    %370 = vmatprep.subr.mxu0 0.0
    %371 = vmatpush2.msra.mxu0 0.0
    %372 = vmatprep.subr.mxu0 0.0
    %373 = vmatpush2.msra.mxu0 0.0
    %374 = vmatprep.subr.mxu0 0.0
    %375 = vmatpush2.msra.mxu0 0.0
    %376 = vmatprep.subr.mxu0 0.0
    %377 = vmatpush2.msra.mxu0 0.0
    %378 = vmatprep.mubr.f32.mxu0 0.0
    %379 = vmatmul.mubr.f32.gmra.mxu0 0.0
    %v380 = vpop.f32.mrf.mxu0
    %v381 = vadd.f32 %v302, %v380
    %v382 = vpop.f32.mrf.mxu0
    %v383 = vadd.f32 %v306, %v382
    %384 = vdwg.mxu0
    %385 = vmatprep.subr.mxu0 0.0
    %386 = vmatpush1.msra.mxu0 %v296
    %387 = vmatprep.subr.mxu0 0.0
    %388 = vmatpush1.msra.mxu0 %v293
    %389 = vmatprep.subr.mxu0 0.0
    %390 = vmatpush1.msra.mxu0 %v290
    %391 = vmatprep.subr.mxu0 0.0
    %392 = vmatpush1.msra.mxu0 %v287
    %393 = vmatprep.subr.mxu0 0.0
    %394 = vmatpush1.msra.mxu0 %v284
    %395 = vmatprep.subr.mxu0 0.0
    %396 = vmatpush1.msra.mxu0 %v281
    %397 = vmatprep.subr.mxu0 0.0
    %398 = vmatpush1.msra.mxu0 %v278
    %399 = vmatprep.subr.mxu0 0.0
    %400 = vmatpush1.msra.mxu0 %v275
    %401 = vmatprep.subr.mxu0 0.0
    %402 = vmatpush1.msra.mxu0 %v272
    %403 = vmatprep.subr.mxu0 0.0
    %404 = vmatpush1.msra.mxu0 %v269
    %405 = vmatprep.subr.mxu0 0.0
    %406 = vmatpush1.msra.mxu0 %v266
    %407 = vmatprep.subr.mxu0 0.0
    %408 = vmatpush1.msra.mxu0 %v263
    %409 = vmatprep.subr.mxu0 0.0
    %410 = vmatpush1.msra.mxu0 %v260
    %411 = vmatprep.subr.mxu0 0.0
    %412 = vmatpush1.msra.mxu0 %v257
    %413 = vmatprep.subr.mxu0 0.0
    %414 = vmatpush1.msra.mxu0 %v254
    %415 = vmatprep.subr.mxu0 0.0
    %416 = vmatpush1.msra.mxu0 %v251
    %417 = vmatprep.subr.mxu0 0.0
    %418 = vmatpush2.msra.mxu0 0.0
    %419 = vmatprep.subr.mxu0 0.0
    %420 = vmatpush2.msra.mxu0 0.0
    %421 = vmatprep.subr.mxu0 0.0
    %422 = vmatpush2.msra.mxu0 0.0
    %423 = vmatprep.subr.mxu0 0.0
    %424 = vmatpush2.msra.mxu0 0.0
    %425 = vmatprep.subr.mxu0 0.0
    %426 = vmatpush2.msra.mxu0 0.0
    %427 = vmatprep.subr.mxu0 0.0
    %428 = vmatpush2.msra.mxu0 0.0
    %429 = vmatprep.subr.mxu0 0.0
    %430 = vmatpush2.msra.mxu0 0.0
    %431 = vmatprep.subr.mxu0 0.0
    %432 = vmatpush2.msra.mxu0 0.0
    %433 = vmatprep.subr.mxu0 0.0
    %434 = vmatpush2.msra.mxu0 0.0
    %435 = vmatprep.subr.mxu0 0.0
    %436 = vmatpush2.msra.mxu0 0.0
    %437 = vmatprep.subr.mxu0 0.0
    %438 = vmatpush2.msra.mxu0 0.0
    %439 = vmatprep.subr.mxu0 0.0
    %440 = vmatpush2.msra.mxu0 0.0
    %441 = vmatprep.subr.mxu0 0.0
    %442 = vmatpush2.msra.mxu0 0.0
    %443 = vmatprep.subr.mxu0 0.0
    %444 = vmatpush2.msra.mxu0 0.0
    %445 = vmatprep.subr.mxu0 0.0
    %446 = vmatpush2.msra.mxu0 0.0
    %447 = vmatprep.subr.mxu0 0.0
    %448 = vmatpush2.msra.mxu0 0.0
    %449 = vmatprep.mubr.f32.mxu0 0.0
    %450 = vmatmul.mubr.f32.gmra.mxu0 0.0
    %v451 = vpop.f32.mrf.mxu0
    %v452 = vadd.f32 %v310, %v451
    %v453 = vpop.f32.mrf.mxu0
    %454 = vdwg.mxu0
    %v455 = vadd.f32 %v142, %v381
    %v456 = vxor.u32 %v455, 2147483648
    %v457 = vmul.f32 %v456, 1.442695
    %v458 = vpow.pop %v457
    %v459 = vadd.f32 %v458, 1.0
    %v460 = vrcp.pop %v459
    %v461 = vmul.f32 1.0, %v460
    %v462 = vadd.f32 %v144, %v383
    %v463 = vxor.u32 %v462, 2147483648
    %v464 = vmul.f32 %v463, 1.442695
    %v465 = vpow.pop %v464
    %v466 = vadd.f32 %v465, 1.0
    %v467 = vrcp.pop %v466
    %v468 = vmul.f32 1.0, %v467
    %v469 = vmul.f32 %v461, %v452
    %v470 = vadd.f32 %v231, %v469
    %v471 = vtanh.pop %v470
    %v472 = vsub.f32 1.0, %v468
    %v473 = vmul.f32 %v472, %v471
    %v474 = vmul.f32 %v468, 0.0
    %v475 = vadd.f32 %v473, %v474
    %476 = vmatprep.subr.mxu0 %v295
    %477 = vmatpush1.msra.mxu0 %v294
    %478 = vmatprep.subr.mxu0 %v292
    %479 = vmatpush1.msra.mxu0 %v291
    %480 = vmatprep.subr.mxu0 %v289
    %481 = vmatpush1.msra.mxu0 %v288
    %482 = vmatprep.subr.mxu0 %v286
    %483 = vmatpush1.msra.mxu0 %v285
    %484 = vmatprep.subr.mxu0 %v283
    %485 = vmatpush1.msra.mxu0 %v282
    %486 = vmatprep.subr.mxu0 %v280
    %487 = vmatpush1.msra.mxu0 %v279
    %488 = vmatprep.subr.mxu0 %v277
    %489 = vmatpush1.msra.mxu0 %v276
    %490 = vmatprep.subr.mxu0 %v274
    %491 = vmatpush1.msra.mxu0 %v273
    %492 = vmatprep.subr.mxu0 %v271
    %493 = vmatpush1.msra.mxu0 %v270
    %494 = vmatprep.subr.mxu0 %v268
    %495 = vmatpush1.msra.mxu0 %v267
    %496 = vmatprep.subr.mxu0 %v265
    %497 = vmatpush1.msra.mxu0 %v264
    %498 = vmatprep.subr.mxu0 %v262
    %499 = vmatpush1.msra.mxu0 %v261
    %500 = vmatprep.subr.mxu0 %v259
    %501 = vmatpush1.msra.mxu0 %v258
    %502 = vmatprep.subr.mxu0 %v256
    %503 = vmatpush1.msra.mxu0 %v255
    %504 = vmatprep.subr.mxu0 %v253
    %505 = vmatpush1.msra.mxu0 %v252
    %506 = vmatprep.subr.mxu0 %v250
    %507 = vmatpush1.msra.mxu0 %v249
    %508 = vmatprep.subr.mxu0 0.0
    %509 = vmatpush2.msra.mxu0 0.0
    %510 = vmatprep.subr.mxu0 0.0
    %511 = vmatpush2.msra.mxu0 0.0
    %512 = vmatprep.subr.mxu0 0.0
    %513 = vmatpush2.msra.mxu0 0.0
    %514 = vmatprep.subr.mxu0 0.0
    %515 = vmatpush2.msra.mxu0 0.0
    %516 = vmatprep.subr.mxu0 0.0
    %517 = vmatpush2.msra.mxu0 0.0
    %518 = vmatprep.subr.mxu0 0.0
    %519 = vmatpush2.msra.mxu0 0.0
    %520 = vmatprep.subr.mxu0 0.0
    %521 = vmatpush2.msra.mxu0 0.0
    %522 = vmatprep.subr.mxu0 0.0
    %523 = vmatpush2.msra.mxu0 0.0
    %524 = vmatprep.subr.mxu0 0.0
    %525 = vmatpush2.msra.mxu0 0.0
    %526 = vmatprep.subr.mxu0 0.0
    %527 = vmatpush2.msra.mxu0 0.0
    %528 = vmatprep.subr.mxu0 0.0
    %529 = vmatpush2.msra.mxu0 0.0
    %530 = vmatprep.subr.mxu0 0.0
    %531 = vmatpush2.msra.mxu0 0.0
    %532 = vmatprep.subr.mxu0 0.0
    %533 = vmatpush2.msra.mxu0 0.0
    %534 = vmatprep.subr.mxu0 0.0
    %535 = vmatpush2.msra.mxu0 0.0
    %536 = vmatprep.subr.mxu0 0.0
    %537 = vmatpush2.msra.mxu0 0.0
    %538 = vmatprep.subr.mxu0 0.0
    %539 = vmatpush2.msra.mxu0 0.0
    %540 = vmatprep.mubr.f32.mxu0 0.0
    %541 = vmatmul.mubr.f32.gmra.mxu0 %v475
    %v542 = vpop.f32.mrf.mxu0
    %v543 = vadd.f32 %v302, %v542
    %v544 = vpop.f32.mrf.mxu0
    %v545 = vadd.f32 %v306, %v544
    %546 = vdwg.mxu0
    %547 = vmatprep.subr.mxu0 0.0
    %548 = vmatpush1.msra.mxu0 %v296
    %549 = vmatprep.subr.mxu0 0.0
    %550 = vmatpush1.msra.mxu0 %v293
    %551 = vmatprep.subr.mxu0 0.0
    %552 = vmatpush1.msra.mxu0 %v290
    %553 = vmatprep.subr.mxu0 0.0
    %554 = vmatpush1.msra.mxu0 %v287
    %555 = vmatprep.subr.mxu0 0.0
    %556 = vmatpush1.msra.mxu0 %v284
    %557 = vmatprep.subr.mxu0 0.0
    %558 = vmatpush1.msra.mxu0 %v281
    %559 = vmatprep.subr.mxu0 0.0
    %560 = vmatpush1.msra.mxu0 %v278
    %561 = vmatprep.subr.mxu0 0.0
    %562 = vmatpush1.msra.mxu0 %v275
    %563 = vmatprep.subr.mxu0 0.0
    %564 = vmatpush1.msra.mxu0 %v272
    %565 = vmatprep.subr.mxu0 0.0
    %566 = vmatpush1.msra.mxu0 %v269
    %567 = vmatprep.subr.mxu0 0.0
    %568 = vmatpush1.msra.mxu0 %v266
    %569 = vmatprep.subr.mxu0 0.0
    %570 = vmatpush1.msra.mxu0 %v263
    %571 = vmatprep.subr.mxu0 0.0
    %572 = vmatpush1.msra.mxu0 %v260
    %573 = vmatprep.subr.mxu0 0.0
    %574 = vmatpush1.msra.mxu0 %v257
    %575 = vmatprep.subr.mxu0 0.0
    %576 = vmatpush1.msra.mxu0 %v254
    %577 = vmatprep.subr.mxu0 0.0
    %578 = vmatpush1.msra.mxu0 %v251
    %579 = vmatprep.subr.mxu0 0.0
    %580 = vmatpush2.msra.mxu0 0.0
    %581 = vmatprep.subr.mxu0 0.0
    %582 = vmatpush2.msra.mxu0 0.0
    %583 = vmatprep.subr.mxu0 0.0
    %584 = vmatpush2.msra.mxu0 0.0
    %585 = vmatprep.subr.mxu0 0.0
    %586 = vmatpush2.msra.mxu0 0.0
    %587 = vmatprep.subr.mxu0 0.0
    %588 = vmatpush2.msra.mxu0 0.0
    %589 = vmatprep.subr.mxu0 0.0
    %590 = vmatpush2.msra.mxu0 0.0
    %591 = vmatprep.subr.mxu0 0.0
    %592 = vmatpush2.msra.mxu0 0.0
    %593 = vmatprep.subr.mxu0 0.0
    %594 = vmatpush2.msra.mxu0 0.0
    %595 = vmatprep.subr.mxu0 0.0
    %596 = vmatpush2.msra.mxu0 0.0
    %597 = vmatprep.subr.mxu0 0.0
    %598 = vmatpush2.msra.mxu0 0.0
    %599 = vmatprep.subr.mxu0 0.0
    %600 = vmatpush2.msra.mxu0 0.0
    %601 = vmatprep.subr.mxu0 0.0
    %602 = vmatpush2.msra.mxu0 0.0
    %603 = vmatprep.subr.mxu0 0.0
    %604 = vmatpush2.msra.mxu0 0.0
    %605 = vmatprep.subr.mxu0 0.0
    %606 = vmatpush2.msra.mxu0 0.0
    %607 = vmatprep.subr.mxu0 0.0
    %608 = vmatpush2.msra.mxu0 0.0
    %609 = vmatprep.subr.mxu0 0.0
    %610 = vmatpush2.msra.mxu0 0.0
    %611 = vmatprep.mubr.f32.mxu0 0.0
    %612 = vmatmul.mubr.f32.gmra.mxu0 %v475
    %v613 = vpop.f32.mrf.mxu0
    %v614 = vadd.f32 %v310, %v613
    %v615 = vpop.f32.mrf.mxu0
    %616 = vdwg.mxu0
    %v618 = vrot.slane %v543, 4
    %v620 = vadd.f32 %v142, %v618
    %v621 = vxor.u32 %v620, 2147483648
    %v622 = vmul.f32 %v621, 1.442695
    %v623 = vpow.pop %v622
    %v624 = vadd.f32 %v623, 1.0
    %v625 = vrcp.pop %v624
    %v626 = vmul.f32 1.0, %v625
    %v628 = vrot.slane %v545, 4
    %v630 = vadd.f32 %v144, %v628
    %v631 = vxor.u32 %v630, 2147483648
    %v632 = vmul.f32 %v631, 1.442695
    %v633 = vpow.pop %v632
    %v634 = vadd.f32 %v633, 1.0
    %v635 = vrcp.pop %v634
    %v636 = vmul.f32 1.0, %v635
    %v638 = vrot.slane %v614, 4
    %v640 = vmul.f32 %v626, %v638
    %v641 = vadd.f32 %v231, %v640
    %v642 = vtanh.pop %v641
    %v643 = vsub.f32 1.0, %v636
    %v644 = vmul.f32 %v643, %v642
    %v646 = vrot.slane %v475, 4
    %v648 = vmul.f32 %v636, %v646
    %v649 = vadd.f32 %v644, %v648
    %v651 = vrot.slane %v649, 4
    %653 = vmatprep.subr.mxu0 %v295
    %654 = vmatpush1.msra.mxu0 %v294
    %655 = vmatprep.subr.mxu0 %v292
    %656 = vmatpush1.msra.mxu0 %v291
    %657 = vmatprep.subr.mxu0 %v289
    %658 = vmatpush1.msra.mxu0 %v288
    %659 = vmatprep.subr.mxu0 %v286
    %660 = vmatpush1.msra.mxu0 %v285
    %661 = vmatprep.subr.mxu0 %v283
    %662 = vmatpush1.msra.mxu0 %v282
    %663 = vmatprep.subr.mxu0 %v280
    %664 = vmatpush1.msra.mxu0 %v279
    %665 = vmatprep.subr.mxu0 %v277
    %666 = vmatpush1.msra.mxu0 %v276
    %667 = vmatprep.subr.mxu0 %v274
    %668 = vmatpush1.msra.mxu0 %v273
    %669 = vmatprep.subr.mxu0 %v271
    %670 = vmatpush1.msra.mxu0 %v270
    %671 = vmatprep.subr.mxu0 %v268
    %672 = vmatpush1.msra.mxu0 %v267
    %673 = vmatprep.subr.mxu0 %v265
    %674 = vmatpush1.msra.mxu0 %v264
    %675 = vmatprep.subr.mxu0 %v262
    %676 = vmatpush1.msra.mxu0 %v261
    %677 = vmatprep.subr.mxu0 %v259
    %678 = vmatpush1.msra.mxu0 %v258
    %679 = vmatprep.subr.mxu0 %v256
    %680 = vmatpush1.msra.mxu0 %v255
    %681 = vmatprep.subr.mxu0 %v253
    %682 = vmatpush1.msra.mxu0 %v252
    %683 = vmatprep.subr.mxu0 %v250
    %684 = vmatpush1.msra.mxu0 %v249
    %685 = vmatprep.subr.mxu0 0.0
    %686 = vmatpush2.msra.mxu0 0.0
    %687 = vmatprep.subr.mxu0 0.0
    %688 = vmatpush2.msra.mxu0 0.0
    %689 = vmatprep.subr.mxu0 0.0
    %690 = vmatpush2.msra.mxu0 0.0
    %691 = vmatprep.subr.mxu0 0.0
    %692 = vmatpush2.msra.mxu0 0.0
    %693 = vmatprep.subr.mxu0 0.0
    %694 = vmatpush2.msra.mxu0 0.0
    %695 = vmatprep.subr.mxu0 0.0
    %696 = vmatpush2.msra.mxu0 0.0
    %697 = vmatprep.subr.mxu0 0.0
    %698 = vmatpush2.msra.mxu0 0.0
    %699 = vmatprep.subr.mxu0 0.0
    %700 = vmatpush2.msra.mxu0 0.0
    %701 = vmatprep.subr.mxu0 0.0
    %702 = vmatpush2.msra.mxu0 0.0
    %703 = vmatprep.subr.mxu0 0.0
    %704 = vmatpush2.msra.mxu0 0.0
    %705 = vmatprep.subr.mxu0 0.0
    %706 = vmatpush2.msra.mxu0 0.0
    %707 = vmatprep.subr.mxu0 0.0
    %708 = vmatpush2.msra.mxu0 0.0
    %709 = vmatprep.subr.mxu0 0.0
    %710 = vmatpush2.msra.mxu0 0.0
    %711 = vmatprep.subr.mxu0 0.0
    %712 = vmatpush2.msra.mxu0 0.0
    %713 = vmatprep.subr.mxu0 0.0
    %714 = vmatpush2.msra.mxu0 0.0
    %715 = vmatprep.subr.mxu0 0.0
    %716 = vmatpush2.msra.mxu0 0.0
    %717 = vmatprep.mubr.f32.mxu0 0.0
    %718 = vmatmul.mubr.f32.gmra.mxu0 %v651
    %v719 = vpop.f32.mrf.mxu0
    %v720 = vadd.f32 %v302, %v719
    %v721 = vpop.f32.mrf.mxu0
    %v722 = vadd.f32 %v306, %v721
    %723 = vdwg.mxu0
    %724 = vmatprep.subr.mxu0 0.0
    %725 = vmatpush1.msra.mxu0 %v296
    %726 = vmatprep.subr.mxu0 0.0
    %727 = vmatpush1.msra.mxu0 %v293
    %728 = vmatprep.subr.mxu0 0.0
    %729 = vmatpush1.msra.mxu0 %v290
    %730 = vmatprep.subr.mxu0 0.0
    %731 = vmatpush1.msra.mxu0 %v287
    %732 = vmatprep.subr.mxu0 0.0
    %733 = vmatpush1.msra.mxu0 %v284
    %734 = vmatprep.subr.mxu0 0.0
    %735 = vmatpush1.msra.mxu0 %v281
    %736 = vmatprep.subr.mxu0 0.0
    %737 = vmatpush1.msra.mxu0 %v278
    %738 = vmatprep.subr.mxu0 0.0
    %739 = vmatpush1.msra.mxu0 %v275
    %740 = vmatprep.subr.mxu0 0.0
    %741 = vmatpush1.msra.mxu0 %v272
    %742 = vmatprep.subr.mxu0 0.0
    %743 = vmatpush1.msra.mxu0 %v269
    %744 = vmatprep.subr.mxu0 0.0
    %745 = vmatpush1.msra.mxu0 %v266
    %746 = vmatprep.subr.mxu0 0.0
    %747 = vmatpush1.msra.mxu0 %v263
    %748 = vmatprep.subr.mxu0 0.0
    %749 = vmatpush1.msra.mxu0 %v260
    %750 = vmatprep.subr.mxu0 0.0
    %751 = vmatpush1.msra.mxu0 %v257
    %752 = vmatprep.subr.mxu0 0.0
    %753 = vmatpush1.msra.mxu0 %v254
    %754 = vmatprep.subr.mxu0 0.0
    %755 = vmatpush1.msra.mxu0 %v251
    %756 = vmatprep.subr.mxu0 0.0
    %757 = vmatpush2.msra.mxu0 0.0
    %758 = vmatprep.subr.mxu0 0.0
    %759 = vmatpush2.msra.mxu0 0.0
    %760 = vmatprep.subr.mxu0 0.0
    %761 = vmatpush2.msra.mxu0 0.0
    %762 = vmatprep.subr.mxu0 0.0
    %763 = vmatpush2.msra.mxu0 0.0
    %764 = vmatprep.subr.mxu0 0.0
    %765 = vmatpush2.msra.mxu0 0.0
    %766 = vmatprep.subr.mxu0 0.0
    %767 = vmatpush2.msra.mxu0 0.0
    %768 = vmatprep.subr.mxu0 0.0
    %769 = vmatpush2.msra.mxu0 0.0
    %770 = vmatprep.subr.mxu0 0.0
    %771 = vmatpush2.msra.mxu0 0.0
    %772 = vmatprep.subr.mxu0 0.0
    %773 = vmatpush2.msra.mxu0 0.0
    %774 = vmatprep.subr.mxu0 0.0
    %775 = vmatpush2.msra.mxu0 0.0
    %776 = vmatprep.subr.mxu0 0.0
    %777 = vmatpush2.msra.mxu0 0.0
    %778 = vmatprep.subr.mxu0 0.0
    %779 = vmatpush2.msra.mxu0 0.0
    %780 = vmatprep.subr.mxu0 0.0
    %781 = vmatpush2.msra.mxu0 0.0
    %782 = vmatprep.subr.mxu0 0.0
    %783 = vmatpush2.msra.mxu0 0.0
    %784 = vmatprep.subr.mxu0 0.0
    %785 = vmatpush2.msra.mxu0 0.0
    %786 = vmatprep.subr.mxu0 0.0
    %787 = vmatpush2.msra.mxu0 0.0
    %788 = vmatprep.mubr.f32.mxu0 0.0
    %789 = vmatmul.mubr.f32.gmra.mxu0 %v651
    %v790 = vpop.f32.mrf.mxu0
    %v791 = vadd.f32 %v310, %v790
    %v792 = vpop.f32.mrf.mxu0
    %793 = vdwg.mxu0
    %v794 = vadd.f32 %v148, %v720
    %v795 = vxor.u32 %v794, 2147483648
    %v796 = vmul.f32 %v795, 1.442695
    %v797 = vpow.pop %v796
    %v798 = vadd.f32 %v797, 1.0
    %v799 = vrcp.pop %v798
    %v800 = vmul.f32 1.0, %v799
    %v801 = vadd.f32 %v150, %v722
    %v802 = vxor.u32 %v801, 2147483648
    %v803 = vmul.f32 %v802, 1.442695
    %v804 = vpow.pop %v803
    %v805 = vadd.f32 %v804, 1.0
    %v806 = vrcp.pop %v805
    %v807 = vmul.f32 1.0, %v806
    %v808 = vmul.f32 %v800, %v791
    %v809 = vadd.f32 %v236, %v808
    %v810 = vtanh.pop %v809
    %v811 = vsub.f32 1.0, %v807
    %v812 = vmul.f32 %v811, %v810
    %v813 = vmul.f32 %v807, %v651
    %v814 = vadd.f32 %v812, %v813
    %815 = vmatprep.subr.mxu0 %v295
    %816 = vmatpush1.msra.mxu0 %v294
    %817 = vmatprep.subr.mxu0 %v292
    %818 = vmatpush1.msra.mxu0 %v291
    %819 = vmatprep.subr.mxu0 %v289
    %820 = vmatpush1.msra.mxu0 %v288
    %821 = vmatprep.subr.mxu0 %v286
    %822 = vmatpush1.msra.mxu0 %v285
    %823 = vmatprep.subr.mxu0 %v283
    %824 = vmatpush1.msra.mxu0 %v282
    %825 = vmatprep.subr.mxu0 %v280
    %826 = vmatpush1.msra.mxu0 %v279
    %827 = vmatprep.subr.mxu0 %v277
    %828 = vmatpush1.msra.mxu0 %v276
    %829 = vmatprep.subr.mxu0 %v274
    %830 = vmatpush1.msra.mxu0 %v273
    %831 = vmatprep.subr.mxu0 %v271
    %832 = vmatpush1.msra.mxu0 %v270
    %833 = vmatprep.subr.mxu0 %v268
    %834 = vmatpush1.msra.mxu0 %v267
    %835 = vmatprep.subr.mxu0 %v265
    %836 = vmatpush1.msra.mxu0 %v264
    %837 = vmatprep.subr.mxu0 %v262
    %838 = vmatpush1.msra.mxu0 %v261
    %839 = vmatprep.subr.mxu0 %v259
    %840 = vmatpush1.msra.mxu0 %v258
    %841 = vmatprep.subr.mxu0 %v256
    %842 = vmatpush1.msra.mxu0 %v255
    %843 = vmatprep.subr.mxu0 %v253
    %844 = vmatpush1.msra.mxu0 %v252
    %845 = vmatprep.subr.mxu0 %v250
    %846 = vmatpush1.msra.mxu0 %v249
    %847 = vmatprep.subr.mxu0 0.0
    %848 = vmatpush2.msra.mxu0 0.0
    %849 = vmatprep.subr.mxu0 0.0
    %850 = vmatpush2.msra.mxu0 0.0
    %851 = vmatprep.subr.mxu0 0.0
    %852 = vmatpush2.msra.mxu0 0.0
    %853 = vmatprep.subr.mxu0 0.0
    %854 = vmatpush2.msra.mxu0 0.0
    %855 = vmatprep.subr.mxu0 0.0
    %856 = vmatpush2.msra.mxu0 0.0
    %857 = vmatprep.subr.mxu0 0.0
    %858 = vmatpush2.msra.mxu0 0.0
    %859 = vmatprep.subr.mxu0 0.0
    %860 = vmatpush2.msra.mxu0 0.0
    %861 = vmatprep.subr.mxu0 0.0
    %862 = vmatpush2.msra.mxu0 0.0
    %863 = vmatprep.subr.mxu0 0.0
    %864 = vmatpush2.msra.mxu0 0.0
    %865 = vmatprep.subr.mxu0 0.0
    %866 = vmatpush2.msra.mxu0 0.0
    %867 = vmatprep.subr.mxu0 0.0
    %868 = vmatpush2.msra.mxu0 0.0
    %869 = vmatprep.subr.mxu0 0.0
    %870 = vmatpush2.msra.mxu0 0.0
    %871 = vmatprep.subr.mxu0 0.0
    %872 = vmatpush2.msra.mxu0 0.0
    %873 = vmatprep.subr.mxu0 0.0
    %874 = vmatpush2.msra.mxu0 0.0
    %875 = vmatprep.subr.mxu0 0.0
    %876 = vmatpush2.msra.mxu0 0.0
    %877 = vmatprep.subr.mxu0 0.0
    %878 = vmatpush2.msra.mxu0 0.0
    %879 = vmatprep.mubr.f32.mxu0 0.0
    %880 = vmatmul.mubr.f32.gmra.mxu0 %v814
    %v881 = vpop.f32.mrf.mxu0
    %v882 = vadd.f32 %v302, %v881
    %v883 = vpop.f32.mrf.mxu0
    %v884 = vadd.f32 %v306, %v883
    %885 = vdwg.mxu0
    %886 = vmatprep.subr.mxu0 0.0
    %887 = vmatpush1.msra.mxu0 %v296
    %888 = vmatprep.subr.mxu0 0.0
    %889 = vmatpush1.msra.mxu0 %v293
    %890 = vmatprep.subr.mxu0 0.0
    %891 = vmatpush1.msra.mxu0 %v290
    %892 = vmatprep.subr.mxu0 0.0
    %893 = vmatpush1.msra.mxu0 %v287
    %894 = vmatprep.subr.mxu0 0.0
    %895 = vmatpush1.msra.mxu0 %v284
    %896 = vmatprep.subr.mxu0 0.0
    %897 = vmatpush1.msra.mxu0 %v281
    %898 = vmatprep.subr.mxu0 0.0
    %899 = vmatpush1.msra.mxu0 %v278
    %900 = vmatprep.subr.mxu0 0.0
    %901 = vmatpush1.msra.mxu0 %v275
    %902 = vmatprep.subr.mxu0 0.0
    %903 = vmatpush1.msra.mxu0 %v272
    %904 = vmatprep.subr.mxu0 0.0
    %905 = vmatpush1.msra.mxu0 %v269
    %906 = vmatprep.subr.mxu0 0.0
    %907 = vmatpush1.msra.mxu0 %v266
    %908 = vmatprep.subr.mxu0 0.0
    %909 = vmatpush1.msra.mxu0 %v263
    %910 = vmatprep.subr.mxu0 0.0
    %911 = vmatpush1.msra.mxu0 %v260
    %912 = vmatprep.subr.mxu0 0.0
    %913 = vmatpush1.msra.mxu0 %v257
    %914 = vmatprep.subr.mxu0 0.0
    %915 = vmatpush1.msra.mxu0 %v254
    %916 = vmatprep.subr.mxu0 0.0
    %917 = vmatpush1.msra.mxu0 %v251
    %918 = vmatprep.subr.mxu0 0.0
    %919 = vmatpush2.msra.mxu0 0.0
    %920 = vmatprep.subr.mxu0 0.0
    %921 = vmatpush2.msra.mxu0 0.0
    %922 = vmatprep.subr.mxu0 0.0
    %923 = vmatpush2.msra.mxu0 0.0
    %924 = vmatprep.subr.mxu0 0.0
    %925 = vmatpush2.msra.mxu0 0.0
    %926 = vmatprep.subr.mxu0 0.0
    %927 = vmatpush2.msra.mxu0 0.0
    %928 = vmatprep.subr.mxu0 0.0
    %929 = vmatpush2.msra.mxu0 0.0
    %930 = vmatprep.subr.mxu0 0.0
    %931 = vmatpush2.msra.mxu0 0.0
    %932 = vmatprep.subr.mxu0 0.0
    %933 = vmatpush2.msra.mxu0 0.0
    %934 = vmatprep.subr.mxu0 0.0
    %935 = vmatpush2.msra.mxu0 0.0
    %936 = vmatprep.subr.mxu0 0.0
    %937 = vmatpush2.msra.mxu0 0.0
    %938 = vmatprep.subr.mxu0 0.0
    %939 = vmatpush2.msra.mxu0 0.0
    %940 = vmatprep.subr.mxu0 0.0
    %941 = vmatpush2.msra.mxu0 0.0
    %942 = vmatprep.subr.mxu0 0.0
    %943 = vmatpush2.msra.mxu0 0.0
    %944 = vmatprep.subr.mxu0 0.0
    %945 = vmatpush2.msra.mxu0 0.0
    %946 = vmatprep.subr.mxu0 0.0
    %947 = vmatpush2.msra.mxu0 0.0
    %948 = vmatprep.subr.mxu0 0.0
    %949 = vmatpush2.msra.mxu0 0.0
    %950 = vmatprep.mubr.f32.mxu0 0.0
    %951 = vmatmul.mubr.f32.gmra.mxu0 %v814
    %v952 = vpop.f32.mrf.mxu0
    %v953 = vadd.f32 %v310, %v952
    %v954 = vpop.f32.mrf.mxu0
    %955 = vdwg.mxu0
    %v957 = vrot.slane %v882, 4
    %v959 = vadd.f32 %v148, %v957
    %v960 = vxor.u32 %v959, 2147483648
    %v961 = vmul.f32 %v960, 1.442695
    %v962 = vpow.pop %v961
    %v963 = vadd.f32 %v962, 1.0
    %v964 = vrcp.pop %v963
    %v965 = vmul.f32 1.0, %v964
    %v967 = vrot.slane %v884, 4
    %v969 = vadd.f32 %v150, %v967
    %v970 = vxor.u32 %v969, 2147483648
    %v971 = vmul.f32 %v970, 1.442695
    %v972 = vpow.pop %v971
    %v973 = vadd.f32 %v972, 1.0
    %v974 = vrcp.pop %v973
    %v975 = vmul.f32 1.0, %v974
    %v977 = vrot.slane %v953, 4
    %v979 = vmul.f32 %v965, %v977
    %v980 = vadd.f32 %v236, %v979
    %v981 = vtanh.pop %v980
    %v982 = vsub.f32 1.0, %v975
    %v983 = vmul.f32 %v982, %v981
    %v985 = vrot.slane %v814, 4
    %v987 = vmul.f32 %v975, %v985
    %v988 = vadd.f32 %v983, %v987
    %v990 = vrot.slane %v988, 4
    %992 = vmatprep.subr.mxu0 %v295
    %993 = vmatpush1.msra.mxu0 %v294
    %994 = vmatprep.subr.mxu0 %v292
    %995 = vmatpush1.msra.mxu0 %v291
    %996 = vmatprep.subr.mxu0 %v289
    %997 = vmatpush1.msra.mxu0 %v288
    %998 = vmatprep.subr.mxu0 %v286
    %999 = vmatpush1.msra.mxu0 %v285
    %1000 = vmatprep.subr.mxu0 %v283
    %1001 = vmatpush1.msra.mxu0 %v282
    %1002 = vmatprep.subr.mxu0 %v280
    %1003 = vmatpush1.msra.mxu0 %v279
    %1004 = vmatprep.subr.mxu0 %v277
    %1005 = vmatpush1.msra.mxu0 %v276
    %1006 = vmatprep.subr.mxu0 %v274
    %1007 = vmatpush1.msra.mxu0 %v273
    %1008 = vmatprep.subr.mxu0 %v271
    %1009 = vmatpush1.msra.mxu0 %v270
    %1010 = vmatprep.subr.mxu0 %v268
    %1011 = vmatpush1.msra.mxu0 %v267
    %1012 = vmatprep.subr.mxu0 %v265
    %1013 = vmatpush1.msra.mxu0 %v264
    %1014 = vmatprep.subr.mxu0 %v262
    %1015 = vmatpush1.msra.mxu0 %v261
    %1016 = vmatprep.subr.mxu0 %v259
    %1017 = vmatpush1.msra.mxu0 %v258
    %1018 = vmatprep.subr.mxu0 %v256
    %1019 = vmatpush1.msra.mxu0 %v255
    %1020 = vmatprep.subr.mxu0 %v253
    %1021 = vmatpush1.msra.mxu0 %v252
    %1022 = vmatprep.subr.mxu0 %v250
    %1023 = vmatpush1.msra.mxu0 %v249
    %1024 = vmatprep.subr.mxu0 0.0
    %1025 = vmatpush2.msra.mxu0 0.0
    %1026 = vmatprep.subr.mxu0 0.0
    %1027 = vmatpush2.msra.mxu0 0.0
    %1028 = vmatprep.subr.mxu0 0.0
    %1029 = vmatpush2.msra.mxu0 0.0
    %1030 = vmatprep.subr.mxu0 0.0
    %1031 = vmatpush2.msra.mxu0 0.0
    %1032 = vmatprep.subr.mxu0 0.0
    %1033 = vmatpush2.msra.mxu0 0.0
    %1034 = vmatprep.subr.mxu0 0.0
    %1035 = vmatpush2.msra.mxu0 0.0
    %1036 = vmatprep.subr.mxu0 0.0
    %1037 = vmatpush2.msra.mxu0 0.0
    %1038 = vmatprep.subr.mxu0 0.0
    %1039 = vmatpush2.msra.mxu0 0.0
    %1040 = vmatprep.subr.mxu0 0.0
    %1041 = vmatpush2.msra.mxu0 0.0
    %1042 = vmatprep.subr.mxu0 0.0
    %1043 = vmatpush2.msra.mxu0 0.0
    %1044 = vmatprep.subr.mxu0 0.0
    %1045 = vmatpush2.msra.mxu0 0.0
    %1046 = vmatprep.subr.mxu0 0.0
    %1047 = vmatpush2.msra.mxu0 0.0
    %1048 = vmatprep.subr.mxu0 0.0
    %1049 = vmatpush2.msra.mxu0 0.0
    %1050 = vmatprep.subr.mxu0 0.0
    %1051 = vmatpush2.msra.mxu0 0.0
    %1052 = vmatprep.subr.mxu0 0.0
    %1053 = vmatpush2.msra.mxu0 0.0
    %1054 = vmatprep.subr.mxu0 0.0
    %1055 = vmatpush2.msra.mxu0 0.0
    %1056 = vmatprep.mubr.f32.mxu0 0.0
    %1057 = vmatmul.mubr.f32.gmra.mxu0 %v990
    %v1058 = vpop.f32.mrf.mxu0
    %v1059 = vadd.f32 %v302, %v1058
    %v1060 = vpop.f32.mrf.mxu0
    %v1061 = vadd.f32 %v306, %v1060
    %1062 = vdwg.mxu0
    %1063 = vmatprep.subr.mxu0 0.0
    %1064 = vmatpush1.msra.mxu0 %v296
    %1065 = vmatprep.subr.mxu0 0.0
    %1066 = vmatpush1.msra.mxu0 %v293
    %1067 = vmatprep.subr.mxu0 0.0
    %1068 = vmatpush1.msra.mxu0 %v290
    %1069 = vmatprep.subr.mxu0 0.0
    %1070 = vmatpush1.msra.mxu0 %v287
    %1071 = vmatprep.subr.mxu0 0.0
    %1072 = vmatpush1.msra.mxu0 %v284
    %1073 = vmatprep.subr.mxu0 0.0
    %1074 = vmatpush1.msra.mxu0 %v281
    %1075 = vmatprep.subr.mxu0 0.0
    %1076 = vmatpush1.msra.mxu0 %v278
    %1077 = vmatprep.subr.mxu0 0.0
    %1078 = vmatpush1.msra.mxu0 %v275
    %1079 = vmatprep.subr.mxu0 0.0
    %1080 = vmatpush1.msra.mxu0 %v272
    %1081 = vmatprep.subr.mxu0 0.0
    %1082 = vmatpush1.msra.mxu0 %v269
    %1083 = vmatprep.subr.mxu0 0.0
    %1084 = vmatpush1.msra.mxu0 %v266
    %1085 = vmatprep.subr.mxu0 0.0
    %1086 = vmatpush1.msra.mxu0 %v263
    %1087 = vmatprep.subr.mxu0 0.0
    %1088 = vmatpush1.msra.mxu0 %v260
    %1089 = vmatprep.subr.mxu0 0.0
    %1090 = vmatpush1.msra.mxu0 %v257
    %1091 = vmatprep.subr.mxu0 0.0
    %1092 = vmatpush1.msra.mxu0 %v254
    %1093 = vmatprep.subr.mxu0 0.0
    %1094 = vmatpush1.msra.mxu0 %v251
    %1095 = vmatprep.subr.mxu0 0.0
    %1096 = vmatpush2.msra.mxu0 0.0
    %1097 = vmatprep.subr.mxu0 0.0
    %1098 = vmatpush2.msra.mxu0 0.0
    %1099 = vmatprep.subr.mxu0 0.0
    %1100 = vmatpush2.msra.mxu0 0.0
    %1101 = vmatprep.subr.mxu0 0.0
    %1102 = vmatpush2.msra.mxu0 0.0
    %1103 = vmatprep.subr.mxu0 0.0
    %1104 = vmatpush2.msra.mxu0 0.0
    %1105 = vmatprep.subr.mxu0 0.0
    %1106 = vmatpush2.msra.mxu0 0.0
    %1107 = vmatprep.subr.mxu0 0.0
    %1108 = vmatpush2.msra.mxu0 0.0
    %1109 = vmatprep.subr.mxu0 0.0
    %1110 = vmatpush2.msra.mxu0 0.0
    %1111 = vmatprep.subr.mxu0 0.0
    %1112 = vmatpush2.msra.mxu0 0.0
    %1113 = vmatprep.subr.mxu0 0.0
    %1114 = vmatpush2.msra.mxu0 0.0
    %1115 = vmatprep.subr.mxu0 0.0
    %1116 = vmatpush2.msra.mxu0 0.0
    %1117 = vmatprep.subr.mxu0 0.0
    %1118 = vmatpush2.msra.mxu0 0.0
    %1119 = vmatprep.subr.mxu0 0.0
    %1120 = vmatpush2.msra.mxu0 0.0
    %1121 = vmatprep.subr.mxu0 0.0
    %1122 = vmatpush2.msra.mxu0 0.0
    %1123 = vmatprep.subr.mxu0 0.0
    %1124 = vmatpush2.msra.mxu0 0.0
    %1125 = vmatprep.subr.mxu0 0.0
    %1126 = vmatpush2.msra.mxu0 0.0
    %1127 = vmatprep.mubr.f32.mxu0 0.0
    %1128 = vmatmul.mubr.f32.gmra.mxu0 %v990
    %v1129 = vpop.f32.mrf.mxu0
    %v1130 = vadd.f32 %v310, %v1129
    %v1131 = vpop.f32.mrf.mxu0
    %1132 = vdwg.mxu0
    %v1133 = vadd.f32 %v154, %v1059
    %v1134 = vxor.u32 %v1133, 2147483648
    %v1135 = vmul.f32 %v1134, 1.442695
    %v1136 = vpow.pop %v1135
    %v1137 = vadd.f32 %v1136, 1.0
    %v1138 = vrcp.pop %v1137
    %v1139 = vmul.f32 1.0, %v1138
    %v1140 = vadd.f32 %v156, %v1061
    %v1141 = vxor.u32 %v1140, 2147483648
    %v1142 = vmul.f32 %v1141, 1.442695
    %v1143 = vpow.pop %v1142
    %v1144 = vadd.f32 %v1143, 1.0
    %v1145 = vrcp.pop %v1144
    %v1146 = vmul.f32 1.0, %v1145
    %v1147 = vmul.f32 %v1139, %v1130
    %v1148 = vadd.f32 %v241, %v1147
    %v1149 = vtanh.pop %v1148
    %v1150 = vsub.f32 1.0, %v1146
    %v1151 = vmul.f32 %v1150, %v1149
    %v1152 = vmul.f32 %v1146, %v990
    %v1153 = vadd.f32 %v1151, %v1152
    %1154 = vmatprep.subr.mxu0 %v295
    %1155 = vmatpush1.msra.mxu0 %v294
    %1156 = vmatprep.subr.mxu0 %v292
    %1157 = vmatpush1.msra.mxu0 %v291
    %1158 = vmatprep.subr.mxu0 %v289
    %1159 = vmatpush1.msra.mxu0 %v288
    %1160 = vmatprep.subr.mxu0 %v286
    %1161 = vmatpush1.msra.mxu0 %v285
    %1162 = vmatprep.subr.mxu0 %v283
    %1163 = vmatpush1.msra.mxu0 %v282
    %1164 = vmatprep.subr.mxu0 %v280
    %1165 = vmatpush1.msra.mxu0 %v279
    %1166 = vmatprep.subr.mxu0 %v277
    %1167 = vmatpush1.msra.mxu0 %v276
    %1168 = vmatprep.subr.mxu0 %v274
    %1169 = vmatpush1.msra.mxu0 %v273
    %1170 = vmatprep.subr.mxu0 %v271
    %1171 = vmatpush1.msra.mxu0 %v270
    %1172 = vmatprep.subr.mxu0 %v268
    %1173 = vmatpush1.msra.mxu0 %v267
    %1174 = vmatprep.subr.mxu0 %v265
    %1175 = vmatpush1.msra.mxu0 %v264
    %1176 = vmatprep.subr.mxu0 %v262
    %1177 = vmatpush1.msra.mxu0 %v261
    %1178 = vmatprep.subr.mxu0 %v259
    %1179 = vmatpush1.msra.mxu0 %v258
    %1180 = vmatprep.subr.mxu0 %v256
    %1181 = vmatpush1.msra.mxu0 %v255
    %1182 = vmatprep.subr.mxu0 %v253
    %1183 = vmatpush1.msra.mxu0 %v252
    %1184 = vmatprep.subr.mxu0 %v250
    %1185 = vmatpush1.msra.mxu0 %v249
    %1186 = vmatprep.subr.mxu0 0.0
    %1187 = vmatpush2.msra.mxu0 0.0
    %1188 = vmatprep.subr.mxu0 0.0
    %1189 = vmatpush2.msra.mxu0 0.0
    %1190 = vmatprep.subr.mxu0 0.0
    %1191 = vmatpush2.msra.mxu0 0.0
    %1192 = vmatprep.subr.mxu0 0.0
    %1193 = vmatpush2.msra.mxu0 0.0
    %1194 = vmatprep.subr.mxu0 0.0
    %1195 = vmatpush2.msra.mxu0 0.0
    %1196 = vmatprep.subr.mxu0 0.0
    %1197 = vmatpush2.msra.mxu0 0.0
    %1198 = vmatprep.subr.mxu0 0.0
    %1199 = vmatpush2.msra.mxu0 0.0
    %1200 = vmatprep.subr.mxu0 0.0
    %1201 = vmatpush2.msra.mxu0 0.0
    %1202 = vmatprep.subr.mxu0 0.0
    %1203 = vmatpush2.msra.mxu0 0.0
    %1204 = vmatprep.subr.mxu0 0.0
    %1205 = vmatpush2.msra.mxu0 0.0
    %1206 = vmatprep.subr.mxu0 0.0
    %1207 = vmatpush2.msra.mxu0 0.0
    %1208 = vmatprep.subr.mxu0 0.0
    %1209 = vmatpush2.msra.mxu0 0.0
    %1210 = vmatprep.subr.mxu0 0.0
    %1211 = vmatpush2.msra.mxu0 0.0
    %1212 = vmatprep.subr.mxu0 0.0
    %1213 = vmatpush2.msra.mxu0 0.0
    %1214 = vmatprep.subr.mxu0 0.0
    %1215 = vmatpush2.msra.mxu0 0.0
    %1216 = vmatprep.subr.mxu0 0.0
    %1217 = vmatpush2.msra.mxu0 0.0
    %1218 = vmatprep.mubr.f32.mxu0 0.0
    %1219 = vmatmul.mubr.f32.gmra.mxu0 %v1153
    %v1220 = vpop.f32.mrf.mxu0
    %v1221 = vadd.f32 %v302, %v1220
    %v1222 = vpop.f32.mrf.mxu0
    %v1223 = vadd.f32 %v306, %v1222
    %1224 = vdwg.mxu0
    %1225 = vmatprep.subr.mxu0 0.0
    %1226 = vmatpush1.msra.mxu0 %v296
    %1227 = vmatprep.subr.mxu0 0.0
    %1228 = vmatpush1.msra.mxu0 %v293
    %1229 = vmatprep.subr.mxu0 0.0
    %1230 = vmatpush1.msra.mxu0 %v290
    %1231 = vmatprep.subr.mxu0 0.0
    %1232 = vmatpush1.msra.mxu0 %v287
    %1233 = vmatprep.subr.mxu0 0.0
    %1234 = vmatpush1.msra.mxu0 %v284
    %1235 = vmatprep.subr.mxu0 0.0
    %1236 = vmatpush1.msra.mxu0 %v281
    %1237 = vmatprep.subr.mxu0 0.0
    %1238 = vmatpush1.msra.mxu0 %v278
    %1239 = vmatprep.subr.mxu0 0.0
    %1240 = vmatpush1.msra.mxu0 %v275
    %1241 = vmatprep.subr.mxu0 0.0
    %1242 = vmatpush1.msra.mxu0 %v272
    %1243 = vmatprep.subr.mxu0 0.0
    %1244 = vmatpush1.msra.mxu0 %v269
    %1245 = vmatprep.subr.mxu0 0.0
    %1246 = vmatpush1.msra.mxu0 %v266
    %1247 = vmatprep.subr.mxu0 0.0
    %1248 = vmatpush1.msra.mxu0 %v263
    %1249 = vmatprep.subr.mxu0 0.0
    %1250 = vmatpush1.msra.mxu0 %v260
    %1251 = vmatprep.subr.mxu0 0.0
    %1252 = vmatpush1.msra.mxu0 %v257
    %1253 = vmatprep.subr.mxu0 0.0
    %1254 = vmatpush1.msra.mxu0 %v254
    %1255 = vmatprep.subr.mxu0 0.0
    %1256 = vmatpush1.msra.mxu0 %v251
    %1257 = vmatprep.subr.mxu0 0.0
    %1258 = vmatpush2.msra.mxu0 0.0
    %1259 = vmatprep.subr.mxu0 0.0
    %1260 = vmatpush2.msra.mxu0 0.0
    %1261 = vmatprep.subr.mxu0 0.0
    %1262 = vmatpush2.msra.mxu0 0.0
    %1263 = vmatprep.subr.mxu0 0.0
    %1264 = vmatpush2.msra.mxu0 0.0
    %1265 = vmatprep.subr.mxu0 0.0
    %1266 = vmatpush2.msra.mxu0 0.0
    %1267 = vmatprep.subr.mxu0 0.0
    %1268 = vmatpush2.msra.mxu0 0.0
    %1269 = vmatprep.subr.mxu0 0.0
    %1270 = vmatpush2.msra.mxu0 0.0
    %1271 = vmatprep.subr.mxu0 0.0
    %1272 = vmatpush2.msra.mxu0 0.0
    %1273 = vmatprep.subr.mxu0 0.0
    %1274 = vmatpush2.msra.mxu0 0.0
    %1275 = vmatprep.subr.mxu0 0.0
    %1276 = vmatpush2.msra.mxu0 0.0
    %1277 = vmatprep.subr.mxu0 0.0
    %1278 = vmatpush2.msra.mxu0 0.0
    %1279 = vmatprep.subr.mxu0 0.0
    %1280 = vmatpush2.msra.mxu0 0.0
    %1281 = vmatprep.subr.mxu0 0.0
    %1282 = vmatpush2.msra.mxu0 0.0
    %1283 = vmatprep.subr.mxu0 0.0
    %1284 = vmatpush2.msra.mxu0 0.0
    %1285 = vmatprep.subr.mxu0 0.0
    %1286 = vmatpush2.msra.mxu0 0.0
    %1287 = vmatprep.subr.mxu0 0.0
    %1288 = vmatpush2.msra.mxu0 0.0
    %1289 = vmatprep.mubr.f32.mxu0 0.0
    %1290 = vmatmul.mubr.f32.gmra.mxu0 %v1153
    %v1291 = vpop.f32.mrf.mxu0
    %v1292 = vadd.f32 %v310, %v1291
    %v1293 = vpop.f32.mrf.mxu0
    %1294 = vdwg.mxu0
    %v1296 = vrot.slane %v1221, 4
    %v1298 = vadd.f32 %v154, %v1296
    %v1299 = vxor.u32 %v1298, 2147483648
    %v1300 = vmul.f32 %v1299, 1.442695
    %v1301 = vpow.pop %v1300
    %v1302 = vadd.f32 %v1301, 1.0
    %v1303 = vrcp.pop %v1302
    %v1304 = vmul.f32 1.0, %v1303
    %v1306 = vrot.slane %v1223, 4
    %v1308 = vadd.f32 %v156, %v1306
    %v1309 = vxor.u32 %v1308, 2147483648
    %v1310 = vmul.f32 %v1309, 1.442695
    %v1311 = vpow.pop %v1310
    %v1312 = vadd.f32 %v1311, 1.0
    %v1313 = vrcp.pop %v1312
    %v1314 = vmul.f32 1.0, %v1313
    %v1316 = vrot.slane %v1292, 4
    %v1318 = vmul.f32 %v1304, %v1316
    %v1319 = vadd.f32 %v241, %v1318
    %v1320 = vtanh.pop %v1319
    %v1321 = vsub.f32 1.0, %v1314
    %v1322 = vmul.f32 %v1321, %v1320
    %v1324 = vrot.slane %v1153, 4
    %v1326 = vmul.f32 %v1314, %v1324
    %v1327 = vadd.f32 %v1322, %v1326
    %v1329 = vrot.slane %v1327, 4
    %1331 = vmatprep.subr.mxu0 %v295
    %1332 = vmatpush1.msra.mxu0 %v294
    %1333 = vmatprep.subr.mxu0 %v292
    %1334 = vmatpush1.msra.mxu0 %v291
    %1335 = vmatprep.subr.mxu0 %v289
    %1336 = vmatpush1.msra.mxu0 %v288
    %1337 = vmatprep.subr.mxu0 %v286
    %1338 = vmatpush1.msra.mxu0 %v285
    %1339 = vmatprep.subr.mxu0 %v283
    %1340 = vmatpush1.msra.mxu0 %v282
    %1341 = vmatprep.subr.mxu0 %v280
    %1342 = vmatpush1.msra.mxu0 %v279
    %1343 = vmatprep.subr.mxu0 %v277
    %1344 = vmatpush1.msra.mxu0 %v276
    %1345 = vmatprep.subr.mxu0 %v274
    %1346 = vmatpush1.msra.mxu0 %v273
    %1347 = vmatprep.subr.mxu0 %v271
    %1348 = vmatpush1.msra.mxu0 %v270
    %1349 = vmatprep.subr.mxu0 %v268
    %1350 = vmatpush1.msra.mxu0 %v267
    %1351 = vmatprep.subr.mxu0 %v265
    %1352 = vmatpush1.msra.mxu0 %v264
    %1353 = vmatprep.subr.mxu0 %v262
    %1354 = vmatpush1.msra.mxu0 %v261
    %1355 = vmatprep.subr.mxu0 %v259
    %1356 = vmatpush1.msra.mxu0 %v258
    %1357 = vmatprep.subr.mxu0 %v256
    %1358 = vmatpush1.msra.mxu0 %v255
    %1359 = vmatprep.subr.mxu0 %v253
    %1360 = vmatpush1.msra.mxu0 %v252
    %1361 = vmatprep.subr.mxu0 %v250
    %1362 = vmatpush1.msra.mxu0 %v249
    %1363 = vmatprep.subr.mxu0 0.0
    %1364 = vmatpush2.msra.mxu0 0.0
    %1365 = vmatprep.subr.mxu0 0.0
    %1366 = vmatpush2.msra.mxu0 0.0
    %1367 = vmatprep.subr.mxu0 0.0
    %1368 = vmatpush2.msra.mxu0 0.0
    %1369 = vmatprep.subr.mxu0 0.0
    %1370 = vmatpush2.msra.mxu0 0.0
    %1371 = vmatprep.subr.mxu0 0.0
    %1372 = vmatpush2.msra.mxu0 0.0
    %1373 = vmatprep.subr.mxu0 0.0
    %1374 = vmatpush2.msra.mxu0 0.0
    %1375 = vmatprep.subr.mxu0 0.0
    %1376 = vmatpush2.msra.mxu0 0.0
    %1377 = vmatprep.subr.mxu0 0.0
    %1378 = vmatpush2.msra.mxu0 0.0
    %1379 = vmatprep.subr.mxu0 0.0
    %1380 = vmatpush2.msra.mxu0 0.0
    %1381 = vmatprep.subr.mxu0 0.0
    %1382 = vmatpush2.msra.mxu0 0.0
    %1383 = vmatprep.subr.mxu0 0.0
    %1384 = vmatpush2.msra.mxu0 0.0
    %1385 = vmatprep.subr.mxu0 0.0
    %1386 = vmatpush2.msra.mxu0 0.0
    %1387 = vmatprep.subr.mxu0 0.0
    %1388 = vmatpush2.msra.mxu0 0.0
    %1389 = vmatprep.subr.mxu0 0.0
    %1390 = vmatpush2.msra.mxu0 0.0
    %1391 = vmatprep.subr.mxu0 0.0
    %1392 = vmatpush2.msra.mxu0 0.0
    %1393 = vmatprep.subr.mxu0 0.0
    %1394 = vmatpush2.msra.mxu0 0.0
    %1395 = vmatprep.mubr.f32.mxu0 0.0
    %1396 = vmatmul.mubr.f32.gmra.mxu0 %v1329
    %v1397 = vpop.f32.mrf.mxu0
    %v1398 = vadd.f32 %v302, %v1397
    %v1399 = vpop.f32.mrf.mxu0
    %v1400 = vadd.f32 %v306, %v1399
    %1401 = vdwg.mxu0
    %1402 = vmatprep.subr.mxu0 0.0
    %1403 = vmatpush1.msra.mxu0 %v296
    %1404 = vmatprep.subr.mxu0 0.0
    %1405 = vmatpush1.msra.mxu0 %v293
    %1406 = vmatprep.subr.mxu0 0.0
    %1407 = vmatpush1.msra.mxu0 %v290
    %1408 = vmatprep.subr.mxu0 0.0
    %1409 = vmatpush1.msra.mxu0 %v287
    %1410 = vmatprep.subr.mxu0 0.0
    %1411 = vmatpush1.msra.mxu0 %v284
    %1412 = vmatprep.subr.mxu0 0.0
    %1413 = vmatpush1.msra.mxu0 %v281
    %1414 = vmatprep.subr.mxu0 0.0
    %1415 = vmatpush1.msra.mxu0 %v278
    %1416 = vmatprep.subr.mxu0 0.0
    %1417 = vmatpush1.msra.mxu0 %v275
    %1418 = vmatprep.subr.mxu0 0.0
    %1419 = vmatpush1.msra.mxu0 %v272
    %1420 = vmatprep.subr.mxu0 0.0
    %1421 = vmatpush1.msra.mxu0 %v269
    %1422 = vmatprep.subr.mxu0 0.0
    %1423 = vmatpush1.msra.mxu0 %v266
    %1424 = vmatprep.subr.mxu0 0.0
    %1425 = vmatpush1.msra.mxu0 %v263
    %1426 = vmatprep.subr.mxu0 0.0
    %1427 = vmatpush1.msra.mxu0 %v260
    %1428 = vmatprep.subr.mxu0 0.0
    %1429 = vmatpush1.msra.mxu0 %v257
    %1430 = vmatprep.subr.mxu0 0.0
    %1431 = vmatpush1.msra.mxu0 %v254
    %1432 = vmatprep.subr.mxu0 0.0
    %1433 = vmatpush1.msra.mxu0 %v251
    %1434 = vmatprep.subr.mxu0 0.0
    %1435 = vmatpush2.msra.mxu0 0.0
    %1436 = vmatprep.subr.mxu0 0.0
    %1437 = vmatpush2.msra.mxu0 0.0
    %1438 = vmatprep.subr.mxu0 0.0
    %1439 = vmatpush2.msra.mxu0 0.0
    %1440 = vmatprep.subr.mxu0 0.0
    %1441 = vmatpush2.msra.mxu0 0.0
    %1442 = vmatprep.subr.mxu0 0.0
    %1443 = vmatpush2.msra.mxu0 0.0
    %1444 = vmatprep.subr.mxu0 0.0
    %1445 = vmatpush2.msra.mxu0 0.0
    %1446 = vmatprep.subr.mxu0 0.0
    %1447 = vmatpush2.msra.mxu0 0.0
    %1448 = vmatprep.subr.mxu0 0.0
    %1449 = vmatpush2.msra.mxu0 0.0
    %1450 = vmatprep.subr.mxu0 0.0
    %1451 = vmatpush2.msra.mxu0 0.0
    %1452 = vmatprep.subr.mxu0 0.0
    %1453 = vmatpush2.msra.mxu0 0.0
    %1454 = vmatprep.subr.mxu0 0.0
    %1455 = vmatpush2.msra.mxu0 0.0
    %1456 = vmatprep.subr.mxu0 0.0
    %1457 = vmatpush2.msra.mxu0 0.0
    %1458 = vmatprep.subr.mxu0 0.0
    %1459 = vmatpush2.msra.mxu0 0.0
    %1460 = vmatprep.subr.mxu0 0.0
    %1461 = vmatpush2.msra.mxu0 0.0
    %1462 = vmatprep.subr.mxu0 0.0
    %1463 = vmatpush2.msra.mxu0 0.0
    %1464 = vmatprep.subr.mxu0 0.0
    %1465 = vmatpush2.msra.mxu0 0.0
    %1466 = vmatprep.mubr.f32.mxu0 0.0
    %1467 = vmatmul.mubr.f32.gmra.mxu0 %v1329
    %v1468 = vpop.f32.mrf.mxu0
    %v1469 = vadd.f32 %v310, %v1468
    %v1470 = vpop.f32.mrf.mxu0
    %1471 = vdwg.mxu0
    %v1472 = vadd.f32 %v160, %v1398
    %v1473 = vxor.u32 %v1472, 2147483648
    %v1474 = vmul.f32 %v1473, 1.442695
    %v1475 = vpow.pop %v1474
    %v1476 = vadd.f32 %v1475, 1.0
    %v1477 = vrcp.pop %v1476
    %v1478 = vmul.f32 1.0, %v1477
    %v1479 = vadd.f32 %v162, %v1400
    %v1480 = vxor.u32 %v1479, 2147483648
    %v1481 = vmul.f32 %v1480, 1.442695
    %v1482 = vpow.pop %v1481
    %v1483 = vadd.f32 %v1482, 1.0
    %v1484 = vrcp.pop %v1483
    %v1485 = vmul.f32 1.0, %v1484
    %v1486 = vmul.f32 %v1478, %v1469
    %v1487 = vadd.f32 %v246, %v1486
    %v1488 = vtanh.pop %v1487
    %v1489 = vsub.f32 1.0, %v1485
    %v1490 = vmul.f32 %v1489, %v1488
    %v1491 = vmul.f32 %v1485, %v1329
    %v1492 = vadd.f32 %v1490, %v1491
    %1493 = vmatprep.subr.mxu0 %v295
    %1494 = vmatpush1.msra.mxu0 %v294
    %1495 = vmatprep.subr.mxu0 %v292
    %1496 = vmatpush1.msra.mxu0 %v291
    %1497 = vmatprep.subr.mxu0 %v289
    %1498 = vmatpush1.msra.mxu0 %v288
    %1499 = vmatprep.subr.mxu0 %v286
    %1500 = vmatpush1.msra.mxu0 %v285
    %1501 = vmatprep.subr.mxu0 %v283
    %1502 = vmatpush1.msra.mxu0 %v282
    %1503 = vmatprep.subr.mxu0 %v280
    %1504 = vmatpush1.msra.mxu0 %v279
    %1505 = vmatprep.subr.mxu0 %v277
    %1506 = vmatpush1.msra.mxu0 %v276
    %1507 = vmatprep.subr.mxu0 %v274
    %1508 = vmatpush1.msra.mxu0 %v273
    %1509 = vmatprep.subr.mxu0 %v271
    %1510 = vmatpush1.msra.mxu0 %v270
    %1511 = vmatprep.subr.mxu0 %v268
    %1512 = vmatpush1.msra.mxu0 %v267
    %1513 = vmatprep.subr.mxu0 %v265
    %1514 = vmatpush1.msra.mxu0 %v264
    %1515 = vmatprep.subr.mxu0 %v262
    %1516 = vmatpush1.msra.mxu0 %v261
    %1517 = vmatprep.subr.mxu0 %v259
    %1518 = vmatpush1.msra.mxu0 %v258
    %1519 = vmatprep.subr.mxu0 %v256
    %1520 = vmatpush1.msra.mxu0 %v255
    %1521 = vmatprep.subr.mxu0 %v253
    %1522 = vmatpush1.msra.mxu0 %v252
    %1523 = vmatprep.subr.mxu0 %v250
    %1524 = vmatpush1.msra.mxu0 %v249
    %1525 = vmatprep.subr.mxu0 0.0
    %1526 = vmatpush2.msra.mxu0 0.0
    %1527 = vmatprep.subr.mxu0 0.0
    %1528 = vmatpush2.msra.mxu0 0.0
    %1529 = vmatprep.subr.mxu0 0.0
    %1530 = vmatpush2.msra.mxu0 0.0
    %1531 = vmatprep.subr.mxu0 0.0
    %1532 = vmatpush2.msra.mxu0 0.0
    %1533 = vmatprep.subr.mxu0 0.0
    %1534 = vmatpush2.msra.mxu0 0.0
    %1535 = vmatprep.subr.mxu0 0.0
    %1536 = vmatpush2.msra.mxu0 0.0
    %1537 = vmatprep.subr.mxu0 0.0
    %1538 = vmatpush2.msra.mxu0 0.0
    %1539 = vmatprep.subr.mxu0 0.0
    %1540 = vmatpush2.msra.mxu0 0.0
    %1541 = vmatprep.subr.mxu0 0.0
    %1542 = vmatpush2.msra.mxu0 0.0
    %1543 = vmatprep.subr.mxu0 0.0
    %1544 = vmatpush2.msra.mxu0 0.0
    %1545 = vmatprep.subr.mxu0 0.0
    %1546 = vmatpush2.msra.mxu0 0.0
    %1547 = vmatprep.subr.mxu0 0.0
    %1548 = vmatpush2.msra.mxu0 0.0
    %1549 = vmatprep.subr.mxu0 0.0
    %1550 = vmatpush2.msra.mxu0 0.0
    %1551 = vmatprep.subr.mxu0 0.0
    %1552 = vmatpush2.msra.mxu0 0.0
    %1553 = vmatprep.subr.mxu0 0.0
    %1554 = vmatpush2.msra.mxu0 0.0
    %1555 = vmatprep.subr.mxu0 0.0
    %1556 = vmatpush2.msra.mxu0 0.0
    %1557 = vmatprep.mubr.f32.mxu0 0.0
    %1558 = vmatmul.mubr.f32.gmra.mxu0 %v1492
    %v1559 = vpop.f32.mrf.mxu0
    %v1560 = vadd.f32 %v302, %v1559
    %v1561 = vpop.f32.mrf.mxu0
    %v1562 = vadd.f32 %v306, %v1561
    %1563 = vdwg.mxu0
    %1564 = vmatprep.subr.mxu0 0.0
    %1565 = vmatpush1.msra.mxu0 %v296
    %1566 = vmatprep.subr.mxu0 0.0
    %1567 = vmatpush1.msra.mxu0 %v293
    %1568 = vmatprep.subr.mxu0 0.0
    %1569 = vmatpush1.msra.mxu0 %v290
    %1570 = vmatprep.subr.mxu0 0.0
    %1571 = vmatpush1.msra.mxu0 %v287
    %1572 = vmatprep.subr.mxu0 0.0
    %1573 = vmatpush1.msra.mxu0 %v284
    %1574 = vmatprep.subr.mxu0 0.0
    %1575 = vmatpush1.msra.mxu0 %v281
    %1576 = vmatprep.subr.mxu0 0.0
    %1577 = vmatpush1.msra.mxu0 %v278
    %1578 = vmatprep.subr.mxu0 0.0
    %1579 = vmatpush1.msra.mxu0 %v275
    %1580 = vmatprep.subr.mxu0 0.0
    %1581 = vmatpush1.msra.mxu0 %v272
    %1582 = vmatprep.subr.mxu0 0.0
    %1583 = vmatpush1.msra.mxu0 %v269
    %1584 = vmatprep.subr.mxu0 0.0
    %1585 = vmatpush1.msra.mxu0 %v266
    %1586 = vmatprep.subr.mxu0 0.0
    %1587 = vmatpush1.msra.mxu0 %v263
    %1588 = vmatprep.subr.mxu0 0.0
    %1589 = vmatpush1.msra.mxu0 %v260
    %1590 = vmatprep.subr.mxu0 0.0
    %1591 = vmatpush1.msra.mxu0 %v257
    %1592 = vmatprep.subr.mxu0 0.0
    %1593 = vmatpush1.msra.mxu0 %v254
    %1594 = vmatprep.subr.mxu0 0.0
    %1595 = vmatpush1.msra.mxu0 %v251
    %1596 = vmatprep.subr.mxu0 0.0
    %1597 = vmatpush2.msra.mxu0 0.0
    %1598 = vmatprep.subr.mxu0 0.0
    %1599 = vmatpush2.msra.mxu0 0.0
    %1600 = vmatprep.subr.mxu0 0.0
    %1601 = vmatpush2.msra.mxu0 0.0
    %1602 = vmatprep.subr.mxu0 0.0
    %1603 = vmatpush2.msra.mxu0 0.0
    %1604 = vmatprep.subr.mxu0 0.0
    %1605 = vmatpush2.msra.mxu0 0.0
    %1606 = vmatprep.subr.mxu0 0.0
    %1607 = vmatpush2.msra.mxu0 0.0
    %1608 = vmatprep.subr.mxu0 0.0
    %1609 = vmatpush2.msra.mxu0 0.0
    %1610 = vmatprep.subr.mxu0 0.0
    %1611 = vmatpush2.msra.mxu0 0.0
    %1612 = vmatprep.subr.mxu0 0.0
    %1613 = vmatpush2.msra.mxu0 0.0
    %1614 = vmatprep.subr.mxu0 0.0
    %1615 = vmatpush2.msra.mxu0 0.0
    %1616 = vmatprep.subr.mxu0 0.0
    %1617 = vmatpush2.msra.mxu0 0.0
    %1618 = vmatprep.subr.mxu0 0.0
    %1619 = vmatpush2.msra.mxu0 0.0
    %1620 = vmatprep.subr.mxu0 0.0
    %1621 = vmatpush2.msra.mxu0 0.0
    %1622 = vmatprep.subr.mxu0 0.0
    %1623 = vmatpush2.msra.mxu0 0.0
    %1624 = vmatprep.subr.mxu0 0.0
    %1625 = vmatpush2.msra.mxu0 0.0
    %1626 = vmatprep.subr.mxu0 0.0
    %1627 = vmatpush2.msra.mxu0 0.0
    %1628 = vmatprep.mubr.f32.mxu0 0.0
    %1629 = vmatmul.mubr.f32.gmra.mxu0 %v1492
    %v1630 = vpop.f32.mrf.mxu0
    %v1631 = vadd.f32 %v310, %v1630
    %v1632 = vpop.f32.mrf.mxu0
    %1633 = vdwg.mxu0
    %v1635 = vrot.slane %v1560, 4
    %v1637 = vadd.f32 %v160, %v1635
    %v1638 = vxor.u32 %v1637, 2147483648
    %v1639 = vmul.f32 %v1638, 1.442695
    %v1640 = vpow.pop %v1639
    %v1641 = vadd.f32 %v1640, 1.0
    %v1642 = vrcp.pop %v1641
    %v1643 = vmul.f32 1.0, %v1642
    %v1645 = vrot.slane %v1562, 4
    %v1647 = vadd.f32 %v162, %v1645
    %v1648 = vxor.u32 %v1647, 2147483648
    %v1649 = vmul.f32 %v1648, 1.442695
    %v1650 = vpow.pop %v1649
    %v1651 = vadd.f32 %v1650, 1.0
    %v1652 = vrcp.pop %v1651
    %v1653 = vmul.f32 1.0, %v1652
    %v1655 = vrot.slane %v1631, 4
    %v1657 = vmul.f32 %v1643, %v1655
    %v1658 = vadd.f32 %v246, %v1657
    %v1659 = vtanh.pop %v1658
    %v1660 = vsub.f32 1.0, %v1653
    %v1661 = vmul.f32 %v1660, %v1659
    %v1663 = vrot.slane %v1492, 4
    %v1665 = vmul.f32 %v1653, %v1663
    %v1666 = vadd.f32 %v1661, %v1665
    %1667 = vst [vmem:[#allocation5 - $0x4] sm:$0xf0] %v1666
    // Predicated region
    $region26: #{tpu_custom_call.1} parent=1 // pred_check
      _
    $region27: #{tpu_custom_call.1} parent=1 // pred_check_branch
      %1669 = sbr.rel (0) target = $region29
    $region28: #{tpu_custom_call.1} parent=1 // pred_region
      %s1671 = ssub.s32 64, 64
      %1672 = vsyncadd [#allocation4], %s1671
      %s1674 = sshll.u32 [#allocation5], 4
      %s1675 = int_to_ptr.vmem [resolvable:$true] %s1674
      %1677 = dma.vmem_to_hbm [thread:$0]  %s1675, 64, %s5, [#allocation4]
    $region29: #{tpu_custom_call.1} parent=1 // pred_fallthru
      _
    // Predicated region
    $region30: #{tpu_custom_call.1} parent=1 // pred_check
      _
    $region31: #{tpu_custom_call.1} parent=1 // pred_check_branch
      %1679 = sbr.rel (0) target = $region33
    $region32: #{tpu_custom_call.1} parent=1 // pred_region
      %1680 = dma.done [#allocation4], 64
    $region33: #{tpu_custom_call.1} parent=1 // pred_fallthru
      _
    %1681 = vsyncpa [#allocation3], 1
    %1682 = vsyncpa [#allocation4], 1

</llo_original>
